<compile_context>
chip_gen: v7x
topology: tpu7x:2x2x1
jax: 0.10.0
libtpu: 0.0.40
codegen_flags: <defaults>
</compile_context>

<pallas_src>
import jax
import jax.numpy as jnp
from jax.experimental import pallas as pl
from jax.experimental.pallas import tpu as pltpu

D_IN, D_H, D_OUT = 287, 100, 1
D_H_PAD = 128    # hidden dims padded to one full lane tile (zero padding is exact)


def house_mlp_kernel(x_ref, w1_ref, b1_ref, w2_ref, b2_ref, w3_ref, b3_ref, o_ref):
    # In-kernel bf16 cast of the streamed x tile (VPU work, hides under the x DMA).
    xb = x_ref[...].astype(jnp.bfloat16)

    # fc1 + ReLU (dropout1 identity in eval mode). bf16 x bf16 -> f32 accumulate on the MXU.
    # K = 287 is unaligned; Mosaic masks/zero-fills the padded lanes, so the result is exact.
    h1 = jnp.dot(xb, w1_ref[...], preferred_element_type=jnp.float32)
    h1 = jnp.maximum(h1 + b1_ref[...], 0.0)
    # Feed layer 2 in bf16 so the MXU stays on its native-input fast path.
    h1 = h1.astype(jnp.bfloat16)

    # fc2 + ReLU (dropout2 identity in eval mode).
    h2 = jnp.dot(h1, w2_ref[...], preferred_element_type=jnp.float32)
    h2 = jnp.maximum(h2 + b2_ref[...], 0.0)

    # fc3: out_features == 1 -> VPU multiply + cross-lane (XLU) reduction instead of an
    # N=1 MXU matmul. w3_ref is the transposed weight row (1, 128) in f32, b3 is an SMEM scalar.
    out = jnp.sum(h2 * w3_ref[...], axis=-1, keepdims=True) + b3_ref[0, 0]
    o_ref[...] = out.astype(o_ref.dtype)


def prepare_params(params):
    """One-time host-side prep: pad hidden 100->128, cast matmul weights to bf16,
    transpose fc3 weight into a (1, 128) row."""
    w1, b1, w2, b2, w3, b3 = params
    w1p = (jnp.zeros((D_IN, D_H_PAD), jnp.float32)
           .at[:, :D_H].set(w1).astype(jnp.bfloat16))          # (287, 128) bf16
    b1p = jnp.zeros((1, D_H_PAD), jnp.float32).at[:, :D_H].set(b1)
    w2p = (jnp.zeros((D_H_PAD, D_H_PAD), jnp.float32)
           .at[:D_H, :D_H].set(w2).astype(jnp.bfloat16))       # (128, 128) bf16
    b2p = jnp.zeros((1, D_H_PAD), jnp.float32).at[:, :D_H].set(b2)
    w3r = jnp.zeros((1, D_H_PAD), jnp.float32).at[:, :D_H].set(w3.T)   # VPU epilogue row
    b3p = jnp.asarray(b3, jnp.float32).reshape(1, 1)                   # SMEM scalar
    return (w1p, b1p, w2p, b2p, w3r, b3p)


def house_network_forward(x, prepped_params, *, bm=2048, vmem_limit_bytes=None):
    """x: (B, 287) float32/bfloat16 -> (B, 1) float32. `prepped_params` from prepare_params().

    bm guidance: v5e <= ~2048 (16 MiB default scoped VMEM), v6e 2048-4096,
    v7x ~4096 with an explicit vmem_limit_bytes (64 MiB physical VMEM); keep B/bm >= 2 on v7x
    so both TensorCores get grid steps."""
    w1, b1, w2, b2, w3r, b3 = prepped_params
    assert bm % 16 == 0, "batch tile must be a multiple of 16 (bf16 sublane packing)"
    B, d_in = x.shape
    assert d_in == D_IN

    grid = (pl.cdiv(B, bm),)   # ragged last tile: OOB output rows are masked on writeback

    def full(shape):
        # Whole (small) tensor resident in VMEM; constant block index -> fetched once.
        return pl.BlockSpec(shape, lambda i: (0, 0))

    # Advisory cost estimate (mem-bound kernel): helps XLA schedule surrounding ops.
    bytes_accessed = int(
        B * D_IN * x.dtype.itemsize + B * D_OUT * 4
        + w1.size * 2 + w2.size * 2 + (b1.size + b2.size + w3r.size + b3.size) * 4)
    cost = pl.CostEstimate(
        flops=2 * B * (D_IN * D_H_PAD + D_H_PAD * D_H_PAD + D_H_PAD),
        transcendentals=0,
        bytes_accessed=bytes_accessed)

    out = pl.pallas_call(
        house_mlp_kernel,
        out_shape=jax.ShapeDtypeStruct((B, D_OUT), jnp.float32),
        grid_spec=pltpu.PrefetchScalarGridSpec(
            num_scalar_prefetch=0,
            grid=grid,
            in_specs=[
                pl.BlockSpec((bm, D_IN), lambda i: (i, 0)),     # x tile, native dtype (no host copy)
                full((D_IN, D_H_PAD)),                          # w1 (bf16)
                full((1, D_H_PAD)),                             # b1 (f32)
                full((D_H_PAD, D_H_PAD)),                       # w2 (bf16)
                full((1, D_H_PAD)),                             # b2 (f32)
                full((1, D_H_PAD)),                             # w3 row (f32)
                pl.BlockSpec(memory_space=pltpu.MemorySpace.SMEM),  # b3 scalar
            ],
            out_specs=pl.BlockSpec((bm, D_OUT), lambda i: (i, 0)),
        ),
        compiler_params=pltpu.CompilerParams(
            dimension_semantics=("parallel",),     # lets v7x shard batch tiles over its 2 TCs
            vmem_limit_bytes=vmem_limit_bytes,     # set explicitly when pushing bm past ~4K
        ),
        cost_estimate=cost,
    )(x, w1, b1, w2, b2, w3r, b3)
    return out


def init_params(key):
    """Deterministic init mimicking PyTorch nn.Linear (uniform +-1/sqrt(fan_in))."""
    def linear(key, fan_in, fan_out):
        kw, kb = jax.random.split(key)
        bound = 1.0 / jnp.sqrt(fan_in)
        w = jax.random.uniform(kw, (fan_in, fan_out), jnp.float32, -bound, bound)
        b = jax.random.uniform(kb, (1, fan_out), jnp.float32, -bound, bound)
        return w, b

    k1, k2, k3 = jax.random.split(key, 3)
    w1, b1 = linear(k1, D_IN, D_H)
    w2, b2 = linear(k2, D_H, D_H)
    w3, b3 = linear(k3, D_H, D_OUT)
    return (w1, b1, w2, b2, w3, b3)


def reference_forward_f32(x, params):
    """Pure f32 reference on the original (unpadded) parameters."""
    w1, b1, w2, b2, w3, b3 = params
    h1 = jnp.maximum(x @ w1 + b1, 0.0)
    h2 = jnp.maximum(h1 @ w2 + b2, 0.0)
    return h2 @ w3 + b3


def reference_forward_bf16(x, prepped_params):
    """Reference mirroring the kernel's bf16/f32 mixed-precision math."""
    w1, b1, w2, b2, w3r, b3 = prepped_params
    xb = x.astype(jnp.bfloat16)
    h1 = jnp.maximum(jnp.dot(xb, w1, preferred_element_type=jnp.float32) + b1, 0.0)
    h1 = h1.astype(jnp.bfloat16)
    h2 = jnp.maximum(jnp.dot(h1, w2, preferred_element_type=jnp.float32) + b2, 0.0)
    return jnp.sum(h2 * w3r, axis=-1, keepdims=True) + b3


if __name__ == "__main__":
    key = jax.random.PRNGKey(0)
    kx, kp = jax.random.split(key)

    # Small demo batch that is NOT a multiple of the tile -> exercises the ragged final tile
    # (no batch padding anywhere) and gives a 2-step grid (both v7x TensorCores would be used).
    B = 300
    x = jax.random.normal(kx, (B, D_IN), jnp.float32)
    params = init_params(kp)
    prepped = prepare_params(params)

    out = house_network_forward(x, prepped, bm=256)   # small bm only for the small demo batch
    out = jax.block_until_ready(out)
    assert out.shape == (B, D_OUT)

    # Tight check vs a reference using identical bf16/f32 mixed precision.
    ref_mixed = reference_forward_bf16(x, prepped)
    assert jnp.allclose(out, ref_mixed, atol=2e-3, rtol=2e-3), \
        "Pallas output mismatch vs mixed-precision reference"

    # Loose check vs the full-f32 reference (bounds the bf16 quantization error).
    ref_f32 = reference_forward_f32(x, params)
    assert jnp.allclose(out, ref_f32, atol=5e-2, rtol=5e-2), \
        "Pallas output deviates too far from the f32 reference"

    print("KERNEL_OK")
</pallas_src>

<mosaic_0001>
module attributes {stable_mosaic.version = 11 : i64} {
  func.func @house_mlp_kernel(%arg0: i32, %arg1: memref<256x287xf32, #tpu.memory_space<vmem>>, %arg2: memref<287x128xbf16, #tpu.memory_space<vmem>>, %arg3: memref<1x128xf32, #tpu.memory_space<vmem>>, %arg4: memref<128x128xbf16, #tpu.memory_space<vmem>>, %arg5: memref<1x128xf32, #tpu.memory_space<vmem>>, %arg6: memref<1x128xf32, #tpu.memory_space<vmem>>, %arg7: memref<1x1xf32, #tpu.memory_space<smem>>, %arg8: memref<256x1xf32, #tpu.memory_space<vmem>>) attributes {dimension_semantics = [#tpu.dimension_semantics<parallel>], iteration_bounds = array<i64: 2>, scalar_prefetch = 0 : i64, scratch_operands = 0 : i64, tpu.core_type = #tpu.core_type<tc>, window_params = [{transform_indices = @transform_0, window_bounds = array<i64: 256, 287>}, {pipeline_mode = #tpu.pipeline_mode<synchronous>, transform_indices = @transform_1, window_bounds = array<i64: 287, 128>}, {pipeline_mode = #tpu.pipeline_mode<synchronous>, transform_indices = @transform_2, window_bounds = array<i64: 1, 128>}, {pipeline_mode = #tpu.pipeline_mode<synchronous>, transform_indices = @transform_3, window_bounds = array<i64: 128, 128>}, {pipeline_mode = #tpu.pipeline_mode<synchronous>, transform_indices = @transform_4, window_bounds = array<i64: 1, 128>}, {pipeline_mode = #tpu.pipeline_mode<synchronous>, transform_indices = @transform_5, window_bounds = array<i64: 1, 128>}, {transform_indices = @transform_6, window_bounds = array<i64: 1, 1>}, {transform_indices = @transform_7, window_bounds = array<i64: 256, 1>}]} {
    %c0 = arith.constant 0 : index
    %c0_0 = arith.constant 0 : index
    %0 = vector.load %arg1[%c0, %c0_0] : memref<256x287xf32, #tpu.memory_space<vmem>>, vector<256x287xf32>
    %1 = arith.truncf %0 : vector<256x287xf32> to vector<256x287xbf16>
    %c0_1 = arith.constant 0 : index
    %c0_2 = arith.constant 0 : index
    %2 = vector.load %arg2[%c0_1, %c0_2] : memref<287x128xbf16, #tpu.memory_space<vmem>>, vector<287x128xbf16>
    %cst = arith.constant dense<0.000000e+00> : vector<256x128xf32>
    %3 = tpu.matmul %1, %2, %cst {dimension_numbers = #tpu.dot_dimension_numbers<[1], [0], [0], [1], [0, 0, 1, 1], [], []>} : vector<256x287xbf16>, vector<287x128xbf16>, vector<256x128xf32> -> vector<256x128xf32>
    %c0_3 = arith.constant 0 : index
    %c0_4 = arith.constant 0 : index
    %4 = vector.load %arg3[%c0_3, %c0_4] : memref<1x128xf32, #tpu.memory_space<vmem>>, vector<1x128xf32>
    %5 = vector.broadcast %4 : vector<1x128xf32> to vector<256x128xf32>
    %6 = arith.addf %3, %5 : vector<256x128xf32>
    %cst_5 = arith.constant 0.000000e+00 : f32
    %7 = vector.broadcast %cst_5 : f32 to vector<256x128xf32>
    %8 = arith.maximumf %6, %7 : vector<256x128xf32>
    %9 = arith.truncf %8 : vector<256x128xf32> to vector<256x128xbf16>
    %c0_6 = arith.constant 0 : index
    %c0_7 = arith.constant 0 : index
    %10 = vector.load %arg4[%c0_6, %c0_7] : memref<128x128xbf16, #tpu.memory_space<vmem>>, vector<128x128xbf16>
    %cst_8 = arith.constant dense<0.000000e+00> : vector<256x128xf32>
    %11 = tpu.matmul %9, %10, %cst_8 {dimension_numbers = #tpu.dot_dimension_numbers<[1], [0], [0], [1], [0, 0, 1, 1], [], []>} : vector<256x128xbf16>, vector<128x128xbf16>, vector<256x128xf32> -> vector<256x128xf32>
    %c0_9 = arith.constant 0 : index
    %c0_10 = arith.constant 0 : index
    %12 = vector.load %arg5[%c0_9, %c0_10] : memref<1x128xf32, #tpu.memory_space<vmem>>, vector<1x128xf32>
    %13 = vector.broadcast %12 : vector<1x128xf32> to vector<256x128xf32>
    %14 = arith.addf %11, %13 : vector<256x128xf32>
    %cst_11 = arith.constant 0.000000e+00 : f32
    %15 = vector.broadcast %cst_11 : f32 to vector<256x128xf32>
    %16 = arith.maximumf %14, %15 : vector<256x128xf32>
    %c0_12 = arith.constant 0 : index
    %c0_13 = arith.constant 0 : index
    %17 = vector.load %arg6[%c0_12, %c0_13] : memref<1x128xf32, #tpu.memory_space<vmem>>, vector<1x128xf32>
    %18 = vector.broadcast %17 : vector<1x128xf32> to vector<256x128xf32>
    %19 = arith.mulf %16, %18 : vector<256x128xf32>
    %cst_14 = arith.constant dense<0.000000e+00> : vector<256xf32>
    %20 = vector.multi_reduction <add>, %19, %cst_14 [1] : vector<256x128xf32> to vector<256xf32>
    %21 = vector.shape_cast %20 : vector<256xf32> to vector<256x1xf32>
    %c0_15 = arith.constant 0 : index
    %c0_16 = arith.constant 0 : index
    %22 = memref.load %arg7[%c0_15, %c0_16] : memref<1x1xf32, #tpu.memory_space<smem>>
    %23 = vector.broadcast %22 : f32 to vector<256x1xf32>
    %24 = arith.addf %21, %23 : vector<256x1xf32>
    %c0_17 = arith.constant 0 : index
    %c0_18 = arith.constant 0 : index
    %25 = vector.load %arg8[%c0_17, %c0_18] : memref<256x1xf32, #tpu.memory_space<vmem>>, vector<256x1xf32>
    tpu.vector_store %arg8[%c0_17, %c0_18], %24 {strides = array<i32>} : memref<256x1xf32, #tpu.memory_space<vmem>>, vector<256x1xf32>,
    return
  }
  func.func @transform_0(%arg0: i32) -> (i32, i32) {
    %c0_i32 = arith.constant 0 : i32
    %c0_i32_0 = arith.constant 0 : i32
    return %arg0, %c0_i32 : i32, i32
  }
  func.func @transform_1(%arg0: i32) -> (i32, i32) {
    %c0_i32 = arith.constant 0 : i32
    %c0_i32_0 = arith.constant 0 : i32
    %c0_i32_1 = arith.constant 0 : i32
    return %c0_i32, %c0_i32_0 : i32, i32
  }
  func.func @transform_2(%arg0: i32) -> (i32, i32) {
    %c0_i32 = arith.constant 0 : i32
    %c0_i32_0 = arith.constant 0 : i32
    %c0_i32_1 = arith.constant 0 : i32
    return %c0_i32, %c0_i32_0 : i32, i32
  }
  func.func @transform_3(%arg0: i32) -> (i32, i32) {
    %c0_i32 = arith.constant 0 : i32
    %c0_i32_0 = arith.constant 0 : i32
    %c0_i32_1 = arith.constant 0 : i32
    return %c0_i32, %c0_i32_0 : i32, i32
  }
  func.func @transform_4(%arg0: i32) -> (i32, i32) {
    %c0_i32 = arith.constant 0 : i32
    %c0_i32_0 = arith.constant 0 : i32
    %c0_i32_1 = arith.constant 0 : i32
    return %c0_i32, %c0_i32_0 : i32, i32
  }
  func.func @transform_5(%arg0: i32) -> (i32, i32) {
    %c0_i32 = arith.constant 0 : i32
    %c0_i32_0 = arith.constant 0 : i32
    %c0_i32_1 = arith.constant 0 : i32
    return %c0_i32, %c0_i32_0 : i32, i32
  }
  func.func @transform_6(%arg0: i32) -> (i32, i32) {
    %c0_i32 = arith.constant 0 : i32
    %c0_i32_0 = arith.constant 0 : i32
    %c0_i32_1 = arith.constant 0 : i32
    return %c0_i32, %c0_i32_0 : i32, i32
  }
  func.func @transform_7(%arg0: i32) -> (i32, i32) {
    %c0_i32 = arith.constant 0 : i32
    %c0_i32_0 = arith.constant 0 : i32
    return %arg0, %c0_i32 : i32, i32
  }
}

</mosaic_0001>

<llo_original>
// kernel: tpu_custom_call.1
$region0: #{tpu_custom_call.1}
  #allocation0 [shape = 'u32[]', space=smem, size = 0x4, offset = 0x4, fixed_abs, tag = 'smem constant byte address 0x4 - core index']
  #allocation1 [shape = 'u32[144,128]{1,0:T(1,128)}', space=vmem, size = 0x12000, scoped, tag = 'internal scratch']
  #allocation2 [shape = 'f32[1,1]{1,0:T(1,128)S(6)}', space=smem, size = 0x200, scoped, tag = 'scoped memory for tpu_custom_call.1']
  %s0 = inlined_call_operand.vmem [shape: f32[300,287], index: 0, kind: input, shape index: {}]
  %s1 = inlined_call_operand.vmem [shape: bf16[287,128], index: 1, kind: input, shape index: {}]
  %s2 = inlined_call_operand.vmem [shape: f32[1,128], index: 2, kind: input, shape index: {}]
  %s3 = inlined_call_operand.vmem [shape: bf16[128,128], index: 3, kind: input, shape index: {}]
  %s4 = inlined_call_operand.vmem [shape: f32[1,128], index: 4, kind: input, shape index: {}]
  %s5 = inlined_call_operand.vmem [shape: f32[1,128], index: 5, kind: input, shape index: {}]
  %s6 = inlined_call_operand.<no memory space> [shape: f32[1,1], index: 6, kind: input, shape index: {}]
  %s7 = inlined_call_operand.vmem [shape: f32[300,1], index: 7, kind: output, shape index: {}]
  %s8 = sld [smem:[#allocation0]]
  $region109: #{tpu_custom_call.1} parent=0
    _
  %s10 = ssub.s32 1, %s8
  %s11 = scalar_select 0, %s10, %s8
  %12 = sst [smem:[#allocation2]] %s6
  $region1: #{tpu_custom_call.1} parent=0
    #allocation3 [shape = 'u8[262144]{0}', space=vmem, size = 0x40000, scoped, tag = 'output window, operand 0']
    loop: start=0, step=1, limit=4
    $region2: #{tpu_custom_call.1} parent=1 // loop_pre_header
      _
    $region3: #{tpu_custom_call.1} parent=1 // loop_header
      %s14 = sphi 0, %s18
      %p15 = scmp.ge.s32.totalorder %s14, 4
      %s24 = sphi 0, %s26
      %s27 = sphi 0, %s24
      %s28 = sphi 0, %s27
      %s44 = sphi 0, %s28
      %s48 = sphi 0, %s48
      %s50 = sphi 0, %s48
      %s51 = sphi 0, %s50
      %s65 = sphi 0, %s51
      %s69 = sphi 0, %s69
      %s71 = sphi 0, %s69
      %s72 = sphi 0, %s71
      %s86 = sphi 0, %s72
      %s90 = sphi 0, %s90
      %s92 = sphi 0, %s90
      %s93 = sphi 0, %s92
      %s107 = sphi 0, %s93
      %s111 = sphi 0, %s111
      %s113 = sphi 0, %s111
      %s114 = sphi 0, %s113
      %s128 = sphi 0, %s114
      %s132 = sphi 0, %s132
      %s134 = sphi 0, %s132
      %s135 = sphi 0, %s134
      %s149 = sphi 0, %s135
      %s153 = sphi 0, %s153
      %s155 = sphi 0, %s153
      %s156 = sphi 0, %s155
      %s170 = sphi 0, %s156
      %s176 = sphi 0, %s178
      %s179 = sphi 0, %s176
      %s180 = sphi 0, %s179
      %s196 = sphi 0, %s180
    $region4: #{tpu_custom_call.1} parent=1 // loop_header_branch
      %17 = sbr.rel (%p15) target = $region8
    $region5: #{tpu_custom_call.1} parent=1 // loop_body
      %s19 = ssub.s32 %s14, 1
      %s20 = ssub.s32 %s14, 2
      %s21 = sadd.s32 %s14, 1
      %s22 = ssub.s32 %s14, %s21
      %p23 = scmp.eq.s32.totalorder %s22, 0
      %s25 = sadd.s32 %s24, 1
      %s26 = scalar_select %p23, %s24, %s25
      %p29 = pneg %p23
      %p30 = scmp.eq.s32.totalorder %s14, 1
      %p31 = por %p29, %p30
      %p32 = scmp.ne.s32.totalorder %s24, %s27
      %p33 = scmp.eq.s32.totalorder %s14, 0
      %p34 = por %p32, %p33
      %p35 = scmp.ne.s32.totalorder %s24, %s27
      %p36 = scmp.eq.s32.totalorder %s19, 1
      %p37 = por %p35, %p36
      %p38 = scmp.ne.s32.totalorder %s27, %s28
      %p39 = scmp.eq.s32.totalorder %s19, 0
      %p40 = por %p38, %p39
      %p41 = scmp.ne.s32.totalorder %s27, %s28
      %p42 = scmp.eq.s32.totalorder %s20, 1
      %p43 = por %p41, %p42
      %p45 = scmp.ne.s32.totalorder %s28, %s44
      %p46 = scmp.eq.s32.totalorder %s20, 0
      %p47 = por %p45, %p46
      %s49 = sadd.s32 %s48, 1
      %p52 = scmp.eq.s32.totalorder %s14, 1
      %p53 = scmp.ne.s32.totalorder %s48, %s50
      %p54 = scmp.eq.s32.totalorder %s14, 0
      %p55 = por %p53, %p54
      %p56 = scmp.ne.s32.totalorder %s48, %s50
      %p57 = scmp.eq.s32.totalorder %s19, 1
      %p58 = por %p56, %p57
      %p59 = scmp.ne.s32.totalorder %s50, %s51
      %p60 = scmp.eq.s32.totalorder %s19, 0
      %p61 = por %p59, %p60
      %p62 = scmp.ne.s32.totalorder %s50, %s51
      %p63 = scmp.eq.s32.totalorder %s20, 1
      %p64 = por %p62, %p63
      %p66 = scmp.ne.s32.totalorder %s51, %s65
      %p67 = scmp.eq.s32.totalorder %s20, 0
      %p68 = por %p66, %p67
      %s70 = sadd.s32 %s69, 1
      %p73 = scmp.eq.s32.totalorder %s14, 1
      %p74 = scmp.ne.s32.totalorder %s69, %s71
      %p75 = scmp.eq.s32.totalorder %s14, 0
      %p76 = por %p74, %p75
      %p77 = scmp.ne.s32.totalorder %s69, %s71
      %p78 = scmp.eq.s32.totalorder %s19, 1
      %p79 = por %p77, %p78
      %p80 = scmp.ne.s32.totalorder %s71, %s72
      %p81 = scmp.eq.s32.totalorder %s19, 0
      %p82 = por %p80, %p81
      %p83 = scmp.ne.s32.totalorder %s71, %s72
      %p84 = scmp.eq.s32.totalorder %s20, 1
      %p85 = por %p83, %p84
      %p87 = scmp.ne.s32.totalorder %s72, %s86
      %p88 = scmp.eq.s32.totalorder %s20, 0
      %p89 = por %p87, %p88
      %s91 = sadd.s32 %s90, 1
      %p94 = scmp.eq.s32.totalorder %s14, 1
      %p95 = scmp.ne.s32.totalorder %s90, %s92
      %p96 = scmp.eq.s32.totalorder %s14, 0
      %p97 = por %p95, %p96
      %p98 = scmp.ne.s32.totalorder %s90, %s92
      %p99 = scmp.eq.s32.totalorder %s19, 1
      %p100 = por %p98, %p99
      %p101 = scmp.ne.s32.totalorder %s92, %s93
      %p102 = scmp.eq.s32.totalorder %s19, 0
      %p103 = por %p101, %p102
      %p104 = scmp.ne.s32.totalorder %s92, %s93
      %p105 = scmp.eq.s32.totalorder %s20, 1
      %p106 = por %p104, %p105
      %p108 = scmp.ne.s32.totalorder %s93, %s107
      %p109 = scmp.eq.s32.totalorder %s20, 0
      %p110 = por %p108, %p109
      %s112 = sadd.s32 %s111, 1
      %p115 = scmp.eq.s32.totalorder %s14, 1
      %p116 = scmp.ne.s32.totalorder %s111, %s113
      %p117 = scmp.eq.s32.totalorder %s14, 0
      %p118 = por %p116, %p117
      %p119 = scmp.ne.s32.totalorder %s111, %s113
      %p120 = scmp.eq.s32.totalorder %s19, 1
      %p121 = por %p119, %p120
      %p122 = scmp.ne.s32.totalorder %s113, %s114
      %p123 = scmp.eq.s32.totalorder %s19, 0
      %p124 = por %p122, %p123
      %p125 = scmp.ne.s32.totalorder %s113, %s114
      %p126 = scmp.eq.s32.totalorder %s20, 1
      %p127 = por %p125, %p126
      %p129 = scmp.ne.s32.totalorder %s114, %s128
      %p130 = scmp.eq.s32.totalorder %s20, 0
      %p131 = por %p129, %p130
      %s133 = sadd.s32 %s132, 1
      %p136 = scmp.eq.s32.totalorder %s14, 1
      %p137 = scmp.ne.s32.totalorder %s132, %s134
      %p138 = scmp.eq.s32.totalorder %s14, 0
      %p139 = por %p137, %p138
      %p140 = scmp.ne.s32.totalorder %s132, %s134
      %p141 = scmp.eq.s32.totalorder %s19, 1
      %p142 = por %p140, %p141
      %p143 = scmp.ne.s32.totalorder %s134, %s135
      %p144 = scmp.eq.s32.totalorder %s19, 0
      %p145 = por %p143, %p144
      %p146 = scmp.ne.s32.totalorder %s134, %s135
      %p147 = scmp.eq.s32.totalorder %s20, 1
      %p148 = por %p146, %p147
      %p150 = scmp.ne.s32.totalorder %s135, %s149
      %p151 = scmp.eq.s32.totalorder %s20, 0
      %p152 = por %p150, %p151
      %s154 = sadd.s32 %s153, 1
      %p157 = scmp.eq.s32.totalorder %s14, 1
      %p158 = scmp.ne.s32.totalorder %s153, %s155
      %p159 = scmp.eq.s32.totalorder %s14, 0
      %p160 = por %p158, %p159
      %p161 = scmp.ne.s32.totalorder %s153, %s155
      %p162 = scmp.eq.s32.totalorder %s19, 1
      %p163 = por %p161, %p162
      %p164 = scmp.ne.s32.totalorder %s155, %s156
      %p165 = scmp.eq.s32.totalorder %s19, 0
      %p166 = por %p164, %p165
      %p167 = scmp.ne.s32.totalorder %s155, %s156
      %p168 = scmp.eq.s32.totalorder %s20, 1
      %p169 = por %p167, %p168
      %p171 = scmp.ne.s32.totalorder %s156, %s170
      %p172 = scmp.eq.s32.totalorder %s20, 0
      %p173 = por %p171, %p172
      %s174 = ssub.s32 %s14, %s21
      %p175 = scmp.eq.s32.totalorder %s174, 0
      %s177 = sadd.s32 %s176, 1
      %s178 = scalar_select %p175, %s176, %s177
      %p181 = pneg %p175
      %p182 = scmp.eq.s32.totalorder %s14, 1
      %p183 = por %p181, %p182
      %p184 = scmp.ne.s32.totalorder %s176, %s179
      %p185 = scmp.eq.s32.totalorder %s14, 0
      %p186 = por %p184, %p185
      %p187 = scmp.ne.s32.totalorder %s176, %s179
      %p188 = scmp.eq.s32.totalorder %s19, 1
      %p189 = por %p187, %p188
      %p190 = scmp.ne.s32.totalorder %s179, %s180
      %p191 = scmp.eq.s32.totalorder %s19, 0
      %p192 = por %p190, %p191
      %p193 = scmp.ne.s32.totalorder %s179, %s180
      %p194 = scmp.eq.s32.totalorder %s20, 1
      %p195 = por %p193, %p194
      %p197 = scmp.ne.s32.totalorder %s180, %s196
      %p198 = scmp.eq.s32.totalorder %s20, 0
      %p199 = por %p197, %p198
      %p200 = scmp.le.s32.totalorder 1, %s14
      %p201 = scmp.lt.s32.totalorder %s14, 3
      %p202 = pnand %p200, %p201
      %p203 = pneg %p202
      // Predicated region
      $region9: #{tpu_custom_call.1} parent=5 // pred_check
        _
      $region10: #{tpu_custom_call.1} parent=5 // pred_check_branch
        %205 = sbr.rel (%p202) target = $region12
      $region11: #{tpu_custom_call.1} parent=5 // pred_region
        %s206 = ssub.s32 %s14, 1
        // Predicated region
        $region13: #{tpu_custom_call.1} parent=11 // pred_check
          %p207 = pneg %p61
        $region14: #{tpu_custom_call.1} parent=11 // pred_check_branch
          %209 = sbr.rel (%p207) target = $region16
        $region15: #{tpu_custom_call.1} parent=11 // pred_region
          _
        $region16: #{tpu_custom_call.1} parent=11 // pred_fallthru
          _
        // Predicated region
        $region17: #{tpu_custom_call.1} parent=11 // pred_check
          %p210 = pneg %p82
        $region18: #{tpu_custom_call.1} parent=11 // pred_check_branch
          %212 = sbr.rel (%p210) target = $region20
        $region19: #{tpu_custom_call.1} parent=11 // pred_region
          _
        $region20: #{tpu_custom_call.1} parent=11 // pred_fallthru
          _
        // Predicated region
        $region21: #{tpu_custom_call.1} parent=11 // pred_check
          %p213 = pneg %p103
        $region22: #{tpu_custom_call.1} parent=11 // pred_check_branch
          %215 = sbr.rel (%p213) target = $region24
        $region23: #{tpu_custom_call.1} parent=11 // pred_region
          _
        $region24: #{tpu_custom_call.1} parent=11 // pred_fallthru
          _
        // Predicated region
        $region25: #{tpu_custom_call.1} parent=11 // pred_check
          %p216 = pneg %p124
        $region26: #{tpu_custom_call.1} parent=11 // pred_check_branch
          %218 = sbr.rel (%p216) target = $region28
        $region27: #{tpu_custom_call.1} parent=11 // pred_region
          _
        $region28: #{tpu_custom_call.1} parent=11 // pred_fallthru
          _
        // Predicated region
        $region29: #{tpu_custom_call.1} parent=11 // pred_check
          %p219 = pneg %p145
        $region30: #{tpu_custom_call.1} parent=11 // pred_check_branch
          %221 = sbr.rel (%p219) target = $region32
        $region31: #{tpu_custom_call.1} parent=11 // pred_region
          _
        $region32: #{tpu_custom_call.1} parent=11 // pred_fallthru
          _
        // Predicated region
        $region33: #{tpu_custom_call.1} parent=11 // pred_check
          %p222 = pneg %p166
        $region34: #{tpu_custom_call.1} parent=11 // pred_check_branch
          %224 = sbr.rel (%p222) target = $region36
        $region35: #{tpu_custom_call.1} parent=11 // pred_region
          _
        $region36: #{tpu_custom_call.1} parent=11 // pred_fallthru
          _
      $region12: #{tpu_custom_call.1} parent=5 // pred_fallthru
        _
      %p225 = scmp.lt.s32.totalorder %s14, 2
      // Predicated region
      $region37: #{tpu_custom_call.1} parent=5 // pred_check
        %p226 = pneg %p225
      $region38: #{tpu_custom_call.1} parent=5 // pred_check_branch
        %228 = sbr.rel (%p226) target = $region40
      $region39: #{tpu_custom_call.1} parent=5 // pred_region
        // Predicated region
        $region41: #{tpu_custom_call.1} parent=39 // pred_check
          %p229 = pneg %p34
        $region42: #{tpu_custom_call.1} parent=39 // pred_check_branch
          %231 = sbr.rel (%p229) target = $region44
        $region43: #{tpu_custom_call.1} parent=39 // pred_region
          %s232 = smul.u32 32, %s14
          %s233 = ssub.s32 38, %s232
          %p234 = scmp.lt.s32.totalorder %s233, 32
          %s235 = scalar_select %p234, %s233, 32
          %s236 = smul.u32 128, %s235
          %s237 = smul.u32 %s236, 3
          %p238 = scmp.lt.s32.totalorder %s232, 37
          %s239 = scalar_select %p238, %s232, 37
          %s240 = smul.addr %s239, 3
          %s241 = smul.addr %s240, 8
          %s242 = scalar_lea.vmem %s0, %s241
          %s243 = smul.u32 32, %s14
          %s244 = ssub.s32 38, %s243
          %p245 = scmp.lt.s32.totalorder %s244, 32
          %s246 = scalar_select %p245, %s244, 32
          %s247 = smul.u32 128, %s246
          %s248 = smul.u32 %s247, 3
        $region44: #{tpu_custom_call.1} parent=39 // pred_fallthru
          _
      $region40: #{tpu_custom_call.1} parent=5 // pred_fallthru
        _
      %p249 = scmp.le.s32.totalorder 1, %s14
      %p250 = scmp.lt.s32.totalorder %s14, 3
      %p251 = pnand %p249, %p250
      %p252 = pneg %p251
      // Predicated region
      $region45: #{tpu_custom_call.1} parent=5 // pred_check
        _
      $region46: #{tpu_custom_call.1} parent=5 // pred_check_branch
        %254 = sbr.rel (%p251) target = $region48
      $region47: #{tpu_custom_call.1} parent=5 // pred_region
        %s255 = ssub.s32 %s14, 1
        %s256 = smul.u32 32, %s19
        %s257 = ssub.s32 38, %s256
        %p258 = scmp.lt.s32.totalorder %s257, 32
        %s259 = scalar_select %p258, %s257, 32
        %s260 = smul.u32 128, %s259
        %s261 = smul.u32 %s260, 3
        %p262 = scmp.lt.s32.totalorder %s256, 37
        %s263 = scalar_select %p262, %s256, 37
        %s264 = smul.addr %s263, 3
        %s265 = smul.addr %s264, 8
        %s266 = scalar_lea.vmem %s0, %s265
        %p267 = pneg %p40
        %p268 = pneg %p37
        %p269 = pneg %p61
        %p270 = pneg %p58
        %p271 = pneg %p82
        %p272 = pneg %p79
        %p273 = pneg %p103
        %p274 = pneg %p100
        %p275 = pneg %p124
        %p276 = pneg %p121
        %p277 = pneg %p145
        %p278 = pneg %p142
        %p279 = pneg %p166
        %p280 = pneg %p163
        %p281 = pneg %p192
        %p282 = pneg %p189
        %s283 = sand.u32 %s179, 1
        %s284 = sand.u32 %s179, 1
        %s285 = smul.addr %s284, 256
        %s286 = scalar_lea.vmem [#allocation3], %s285
        %s287 = smul.u32 32, %s19
        %s288 = ssub.s32 38, %s287
        %p289 = scmp.lt.s32.totalorder %s288, 32
        %s290 = scalar_select %p289, %s288, 32
        %s291 = smul.u32 128, %s290
        %s292 = smul.u32 %s291, 3
        %p293 = scmp.lt.s32.totalorder %s287, 37
        %s294 = scalar_select %p293, %s287, 37
        %s295 = smul.addr %s294, 3
        %s296 = smul.addr %s295, 8
        %s297 = scalar_lea.vmem %s0, %s296
        %s298 = smul.u32 32, %s19
        %s299 = ssub.s32 38, %s298
        %p300 = scmp.lt.s32.totalorder %s299, 32
        %s301 = scalar_select %p300, %s299, 32
        %s302 = smul.u32 128, %s301
        %s303 = smul.u32 %s302, 3
        %s304 = smul.u32 32, %s19
        %s305 = ssub.s32 38, %s304
        %p306 = scmp.lt.s32.totalorder %s305, 32
        %s307 = scalar_select %p306, %s305, 32
        %s308 = smul.u32 128, %s307
        %v310 = vld [vmem:[%s297] sm:$0xff]
        %v311 = vld [vmem:[%s297 + $0x8] sm:$0xff]
        %v312 = vld [vmem:[%s297 + $0x10] sm:$0xff]
        %v313 = vld [vmem:[%s297 + $0x18] sm:$0xff]
        %v314 = vld [vmem:[%s297 + $0x20] sm:$0xff]
        %v315 = vld [vmem:[%s297 + $0x28] sm:$0xff]
        %v316 = vld [vmem:[%s297 + $0x30] sm:$0xff]
        %v317 = vld [vmem:[%s297 + $0x38] sm:$0xff]
        %v318 = vld [vmem:[%s297 + $0x40] sm:$0xff]
        %v319 = vld [vmem:[%s297 + $0x48] sm:$0xff]
        %v320 = vld [vmem:[%s297 + $0x50] sm:$0xff]
        %v321 = vld [vmem:[%s297 + $0x58] sm:$0xff]
        %v322 = vld [vmem:[%s297 + $0x60] sm:$0xff]
        %v323 = vld [vmem:[%s297 + $0x68] sm:$0xff]
        %v324 = vld [vmem:[%s297 + $0x70] sm:$0xff]
        %v325 = vld [vmem:[%s297 + $0x78] sm:$0xff]
        %v326 = vld [vmem:[%s297 + $0x80] sm:$0xff]
        %v327 = vld [vmem:[%s297 + $0x88] sm:$0xff]
        %v328 = vld [vmem:[%s297 + $0x90] sm:$0xff]
        %v329 = vld [vmem:[%s297 + $0x98] sm:$0xff]
        %v330 = vld [vmem:[%s297 + $0xa0] sm:$0xff]
        %v331 = vld [vmem:[%s297 + $0xa8] sm:$0xff]
        %v332 = vld [vmem:[%s297 + $0xb0] sm:$0xff]
        %v333 = vld [vmem:[%s297 + $0xb8] sm:$0xff]
        %v334 = vld [vmem:[%s297 + $0xc0] sm:$0xff]
        %v335 = vld [vmem:[%s297 + $0xc8] sm:$0xff]
        %v336 = vld [vmem:[%s297 + $0xd0] sm:$0xff]
        %v337 = vld [vmem:[%s297 + $0xd8] sm:$0xff]
        %v338 = vld [vmem:[%s297 + $0xe0] sm:$0xff]
        %v339 = vld [vmem:[%s297 + $0xe8] sm:$0xff]
        %v340 = vld [vmem:[%s297 + $0xf0] sm:$0xff]
        %v341 = vld [vmem:[%s297 + $0xf8] sm:$0xff]
        %v342 = vld [vmem:[%s297 + $0x100] sm:$0xff]
        %v343 = vld [vmem:[%s297 + $0x108] sm:$0xff]
        %v344 = vld [vmem:[%s297 + $0x110] sm:$0xff]
        %v345 = vld [vmem:[%s297 + $0x118] sm:$0xff]
        %v346 = vld [vmem:[%s297 + $0x120] sm:$0xff]
        %v347 = vld [vmem:[%s297 + $0x128] sm:$0xff]
        %v348 = vld [vmem:[%s297 + $0x130] sm:$0xff]
        %v349 = vld [vmem:[%s297 + $0x138] sm:$0xff]
        %v350 = vld [vmem:[%s297 + $0x140] sm:$0xff]
        %v351 = vld [vmem:[%s297 + $0x148] sm:$0xff]
        %v352 = vld [vmem:[%s297 + $0x150] sm:$0xff]
        %v353 = vld [vmem:[%s297 + $0x158] sm:$0xff]
        %v354 = vld [vmem:[%s297 + $0x160] sm:$0xff]
        %v355 = vld [vmem:[%s297 + $0x168] sm:$0xff]
        %v356 = vld [vmem:[%s297 + $0x170] sm:$0xff]
        %v357 = vld [vmem:[%s297 + $0x178] sm:$0xff]
        %v358 = vld [vmem:[%s297 + $0x180] sm:$0xff]
        %v359 = vld [vmem:[%s297 + $0x188] sm:$0xff]
        %v360 = vld [vmem:[%s297 + $0x190] sm:$0xff]
        %v361 = vld [vmem:[%s297 + $0x198] sm:$0xff]
        %v362 = vld [vmem:[%s297 + $0x1a0] sm:$0xff]
        %v363 = vld [vmem:[%s297 + $0x1a8] sm:$0xff]
        %v364 = vld [vmem:[%s297 + $0x1b0] sm:$0xff]
        %v365 = vld [vmem:[%s297 + $0x1b8] sm:$0xff]
        %v366 = vld [vmem:[%s297 + $0x1c0] sm:$0xff]
        %v367 = vld [vmem:[%s297 + $0x1c8] sm:$0xff]
        %v368 = vld [vmem:[%s297 + $0x1d0] sm:$0xff]
        %v369 = vld [vmem:[%s297 + $0x1d8] sm:$0xff]
        %v370 = vld [vmem:[%s297 + $0x1e0] sm:$0xff]
        %v371 = vld [vmem:[%s297 + $0x1e8] sm:$0xff]
        %v372 = vld [vmem:[%s297 + $0x1f0] sm:$0xff]
        %v373 = vld [vmem:[%s297 + $0x1f8] sm:$0xff]
        %v374 = vld [vmem:[%s297 + $0x200] sm:$0xff]
        %v375 = vld [vmem:[%s297 + $0x208] sm:$0xff]
        %v376 = vld [vmem:[%s297 + $0x210] sm:$0xff]
        %v377 = vld [vmem:[%s297 + $0x218] sm:$0xff]
        %v378 = vld [vmem:[%s297 + $0x220] sm:$0xff]
        %v379 = vld [vmem:[%s297 + $0x228] sm:$0xff]
        %v380 = vld [vmem:[%s297 + $0x230] sm:$0xff]
        %v381 = vld [vmem:[%s297 + $0x238] sm:$0xff]
        %v382 = vld [vmem:[%s297 + $0x240] sm:$0xff]
        %v383 = vld [vmem:[%s297 + $0x248] sm:$0xff]
        %v384 = vld [vmem:[%s297 + $0x250] sm:$0xff]
        %v385 = vld [vmem:[%s297 + $0x258] sm:$0xff]
        %v386 = vld [vmem:[%s297 + $0x260] sm:$0xff]
        %v387 = vld [vmem:[%s297 + $0x268] sm:$0xff]
        %v388 = vld [vmem:[%s297 + $0x270] sm:$0xff]
        %v389 = vld [vmem:[%s297 + $0x278] sm:$0xff]
        %v390 = vld [vmem:[%s297 + $0x280] sm:$0xff]
        %v391 = vld [vmem:[%s297 + $0x288] sm:$0xff]
        %v392 = vld [vmem:[%s297 + $0x290] sm:$0xff]
        %v393 = vld [vmem:[%s297 + $0x298] sm:$0xff]
        %v394 = vld [vmem:[%s297 + $0x2a0] sm:$0xff]
        %v395 = vld [vmem:[%s297 + $0x2a8] sm:$0xff]
        %v396 = vld [vmem:[%s297 + $0x2b0] sm:$0xff]
        %v397 = vld [vmem:[%s297 + $0x2b8] sm:$0xff]
        %v398 = vld [vmem:[%s297 + $0x2c0] sm:$0xff]
        %v399 = vld [vmem:[%s297 + $0x2c8] sm:$0xff]
        %v400 = vld [vmem:[%s297 + $0x2d0] sm:$0xff]
        %v401 = vld [vmem:[%s297 + $0x2d8] sm:$0xff]
        %v402 = vld [vmem:[%s297 + $0x2e0] sm:$0xff]
        %v403 = vld [vmem:[%s297 + $0x2e8] sm:$0xff]
        %v404 = vld [vmem:[%s297 + $0x2f0] sm:$0xff]
        %v405 = vld [vmem:[%s297 + $0x2f8] sm:$0xff]
        %v406 = vpack.c.bf16 %v313, %v310
        %v407 = vpack.c.bf16 %v314, %v311
        %v408 = vpack.c.bf16 %v315, %v312
        %v409 = vpack.c.bf16 %v319, %v316
        %v410 = vpack.c.bf16 %v320, %v317
        %v411 = vpack.c.bf16 %v321, %v318
        %v412 = vpack.c.bf16 %v325, %v322
        %v413 = vpack.c.bf16 %v326, %v323
        %v414 = vpack.c.bf16 %v327, %v324
        %v415 = vpack.c.bf16 %v331, %v328
        %v416 = vpack.c.bf16 %v332, %v329
        %v417 = vpack.c.bf16 %v333, %v330
        %v418 = vpack.c.bf16 %v337, %v334
        %v419 = vpack.c.bf16 %v338, %v335
        %v420 = vpack.c.bf16 %v339, %v336
        %v421 = vpack.c.bf16 %v343, %v340
        %v422 = vpack.c.bf16 %v344, %v341
        %v423 = vpack.c.bf16 %v345, %v342
        %v424 = vpack.c.bf16 %v349, %v346
        %v425 = vpack.c.bf16 %v350, %v347
        %v426 = vpack.c.bf16 %v351, %v348
        %v427 = vpack.c.bf16 %v355, %v352
        %v428 = vpack.c.bf16 %v356, %v353
        %v429 = vpack.c.bf16 %v357, %v354
        %v430 = vpack.c.bf16 %v361, %v358
        %v431 = vpack.c.bf16 %v362, %v359
        %v432 = vpack.c.bf16 %v363, %v360
        %v433 = vpack.c.bf16 %v367, %v364
        %v434 = vpack.c.bf16 %v368, %v365
        %v435 = vpack.c.bf16 %v369, %v366
        %v436 = vpack.c.bf16 %v373, %v370
        %v437 = vpack.c.bf16 %v374, %v371
        %v438 = vpack.c.bf16 %v375, %v372
        %v439 = vpack.c.bf16 %v379, %v376
        %v440 = vpack.c.bf16 %v380, %v377
        %v441 = vpack.c.bf16 %v381, %v378
        %v442 = vpack.c.bf16 %v385, %v382
        %v443 = vpack.c.bf16 %v386, %v383
        %v444 = vpack.c.bf16 %v387, %v384
        %v445 = vpack.c.bf16 %v391, %v388
        %v446 = vpack.c.bf16 %v392, %v389
        %v447 = vpack.c.bf16 %v393, %v390
        %v448 = vpack.c.bf16 %v397, %v394
        %v449 = vpack.c.bf16 %v398, %v395
        %v450 = vpack.c.bf16 %v399, %v396
        %v451 = vpack.c.bf16 %v403, %v400
        %v452 = vpack.c.bf16 %v404, %v401
        %v453 = vpack.c.bf16 %v405, %v402
        %v454 = vld [vmem:[%s1] sm:$0xf]
        %v455 = vld [vmem:[%s1 + $0x4] sm:$0xf]
        %v456 = vld [vmem:[%s1 + $0x8] sm:$0xf]
        %v457 = vld [vmem:[%s1 + $0xc] sm:$0xf]
        %v458 = vld [vmem:[%s1 + $0x10] sm:$0xf]
        %v459 = vld [vmem:[%s1 + $0x14] sm:$0xf]
        %v460 = vld [vmem:[%s1 + $0x18] sm:$0xf]
        %v461 = vld [vmem:[%s1 + $0x1c] sm:$0xf]
        %v462 = vld [vmem:[%s1 + $0x20] sm:$0xf]
        %v463 = vld [vmem:[%s1 + $0x24] sm:$0xf]
        %v464 = vld [vmem:[%s1 + $0x28] sm:$0xf]
        %v465 = vld [vmem:[%s1 + $0x2c] sm:$0xf]
        %v466 = vld [vmem:[%s1 + $0x30] sm:$0xf]
        %v467 = vld [vmem:[%s1 + $0x34] sm:$0xf]
        %v468 = vld [vmem:[%s1 + $0x38] sm:$0xf]
        %v469 = vld [vmem:[%s1 + $0x3c] sm:$0xf]
        %v470 = vld [vmem:[%s1 + $0x40] sm:$0xf]
        %v471 = vld [vmem:[%s1 + $0x44] sm:$0xf]
        %v472 = vld [vmem:[%s1 + $0x48] sm:$0xf]
        %v473 = vld [vmem:[%s1 + $0x4c] sm:$0xf]
        %v474 = vld [vmem:[%s1 + $0x50] sm:$0xf]
        %v475 = vld [vmem:[%s1 + $0x54] sm:$0xf]
        %v476 = vld [vmem:[%s1 + $0x58] sm:$0xf]
        %v477 = vld [vmem:[%s1 + $0x5c] sm:$0xf]
        %v478 = vld [vmem:[%s1 + $0x60] sm:$0xf]
        %v479 = vld [vmem:[%s1 + $0x64] sm:$0xf]
        %v480 = vld [vmem:[%s1 + $0x68] sm:$0xf]
        %v481 = vld [vmem:[%s1 + $0x6c] sm:$0xf]
        %v482 = vld [vmem:[%s1 + $0x70] sm:$0xf]
        %v483 = vld [vmem:[%s1 + $0x74] sm:$0xf]
        %v484 = vld [vmem:[%s1 + $0x78] sm:$0xf]
        %v485 = vld [vmem:[%s1 + $0x7c] sm:$0xf]
        %v486 = vld [vmem:[%s1 + $0x80] sm:$0xf]
        %v487 = vld [vmem:[%s1 + $0x84] sm:$0xf]
        %v488 = vld [vmem:[%s1 + $0x88] sm:$0xf]
        %v489 = vld [vmem:[%s1 + $0x8c] sm:$0xf]
        %v490 = vld [vmem:[%s2] sm:$0x1]
        %v492 = vlaneseq
        %v493 = vshrl.u32 %v492, 7
        %v494 = vsub.s32 0, %v493
        %v495 = vrot.slane %v490, %v494
        %v533 = vunpack.c.l.b16 %v454
        %v534 = vunpack.c.l.b16 %v455
        %v535 = vunpack.c.l.b16 %v456
        %v536 = vunpack.c.l.b16 %v457
        %v537 = vunpack.c.l.b16 %v458
        %v538 = vunpack.c.l.b16 %v459
        %v539 = vunpack.c.l.b16 %v460
        %v540 = vunpack.c.l.b16 %v461
        %v541 = vunpack.c.l.b16 %v462
        %v542 = vunpack.c.l.b16 %v463
        %v543 = vunpack.c.l.b16 %v464
        %v544 = vunpack.c.l.b16 %v465
        %v545 = vunpack.c.l.b16 %v466
        %v546 = vunpack.c.l.b16 %v467
        %v547 = vunpack.c.l.b16 %v468
        %v548 = vunpack.c.l.b16 %v469
        %v549 = vunpack.c.l.b16 %v470
        %v550 = vunpack.c.l.b16 %v471
        %v551 = vunpack.c.l.b16 %v472
        %v552 = vunpack.c.l.b16 %v473
        %v553 = vunpack.c.l.b16 %v474
        %v554 = vunpack.c.l.b16 %v475
        %v555 = vunpack.c.l.b16 %v476
        %v556 = vunpack.c.l.b16 %v477
        %v557 = vunpack.c.l.b16 %v478
        %v558 = vunpack.c.l.b16 %v479
        %v559 = vunpack.c.l.b16 %v480
        %v560 = vunpack.c.l.b16 %v481
        %v561 = vunpack.c.l.b16 %v482
        %v562 = vunpack.c.l.b16 %v483
        %v563 = vunpack.c.l.b16 %v484
        %v564 = vunpack.c.l.b16 %v485
        %v565 = vunpack.c.l.b16 %v486
        %v566 = vunpack.c.l.b16 %v487
        %v567 = vunpack.c.l.b16 %v488
        %v568 = vunpack.c.l.b16 %v489
        %v569 = vpack.c.b16 %v534, %v533
        %v570 = vpack.c.b16 %v536, %v535
        %v571 = vpack.c.b16 %v538, %v537
        %v572 = vpack.c.b16 %v540, %v539
        %v573 = vpack.c.b16 %v542, %v541
        %v574 = vpack.c.b16 %v544, %v543
        %v575 = vpack.c.b16 %v546, %v545
        %v576 = vpack.c.b16 %v548, %v547
        %v577 = vpack.c.b16 %v550, %v549
        %v578 = vpack.c.b16 %v552, %v551
        %v579 = vpack.c.b16 %v554, %v553
        %v580 = vpack.c.b16 %v556, %v555
        %v581 = vpack.c.b16 %v558, %v557
        %v582 = vpack.c.b16 %v560, %v559
        %v583 = vpack.c.b16 %v562, %v561
        %v584 = vpack.c.b16 %v564, %v563
        %v585 = vpack.c.b16 %v566, %v565
        %v586 = vpack.c.b16 %v568, %v567
        %vm604 = vcmask 252928
        %v606 = vsel %vm604, %v408, 0
        %v609 = vsel %vm604, %v411, 0
        %v612 = vsel %vm604, %v414, 0
        %v615 = vsel %vm604, %v417, 0
        %v618 = vsel %vm604, %v420, 0
        %v621 = vsel %vm604, %v423, 0
        %v624 = vsel %vm604, %v426, 0
        %v627 = vsel %vm604, %v429, 0
        %v630 = vsel %vm604, %v432, 0
        %v633 = vsel %vm604, %v435, 0
        %v636 = vsel %vm604, %v438, 0
        %v639 = vsel %vm604, %v441, 0
        %v642 = vsel %vm604, %v444, 0
        %v645 = vsel %vm604, %v447, 0
        %v648 = vsel %vm604, %v450, 0
        %v651 = vsel %vm604, %v453, 0
        %vm653 = vcmask 1046528
        %vm654 = vcmask 1047552
        %v655 = vsel %vm653, 4294967295, 65535
        %v656 = vsel %vm654, %v655, 0
        %v658 = vand.u32 %v586, %v656
        %660 = vmatprep.subr.bf16.mxu0 0
        %661 = vmatpush1.bf16.msra.mxu0 %v569
        %662 = vmatprep.subr.bf16.mxu0 0
        %663 = vmatpush1.bf16.msra.mxu0 %v570
        %664 = vmatprep.subr.bf16.mxu0 0
        %665 = vmatpush1.bf16.msra.mxu0 %v571
        %666 = vmatprep.subr.bf16.mxu0 0
        %667 = vmatpush1.bf16.msra.mxu0 %v572
        %668 = vmatprep.subr.bf16.mxu0 0
        %669 = vmatpush1.bf16.msra.mxu0 %v573
        %670 = vmatprep.subr.bf16.mxu0 0
        %671 = vmatpush1.bf16.msra.mxu0 %v574
        %672 = vmatprep.subr.bf16.mxu0 0
        %673 = vmatpush1.bf16.msra.mxu0 %v575
        %674 = vmatprep.subr.bf16.mxu0 0
        %675 = vmatpush1.bf16.msra.mxu0 %v576
        %676 = vmatprep.subr.bf16.mxu0 0
        %677 = vmatpush1.bf16.msra.mxu0 %v577
        %678 = vmatprep.subr.bf16.mxu0 0
        %679 = vmatpush1.bf16.msra.mxu0 %v578
        %680 = vmatprep.subr.bf16.mxu0 0
        %681 = vmatpush1.bf16.msra.mxu0 %v579
        %682 = vmatprep.subr.bf16.mxu0 0
        %683 = vmatpush1.bf16.msra.mxu0 %v580
        %684 = vmatprep.subr.bf16.mxu0 0
        %685 = vmatpush1.bf16.msra.mxu0 %v581
        %686 = vmatprep.subr.bf16.mxu0 0
        %687 = vmatpush1.bf16.msra.mxu0 %v582
        %688 = vmatprep.subr.bf16.mxu0 0
        %689 = vmatpush1.bf16.msra.mxu0 %v583
        %690 = vmatprep.subr.bf16.mxu0 0
        %691 = vmatpush1.bf16.msra.mxu0 %v584
        %692 = vmatprep.mubr.bf16.mxu0 %v407
        %693 = vmatmul.mubr.bf16.gmra.mrb[0].mxu0 %v406
        %v694 = vpop.f32.mrb[0].mxu0
        %v695 = vadd.f32 %v495, %v694
        %v696 = vpop.f32.mrb[0].mxu0
        %v697 = vpop.f32.mrb[0].mxu0
        %v698 = vadd.f32 %v495, %v697
        %v699 = vpop.f32.mrb[0].mxu0
        %700 = vmatprep.mubr.bf16.mxu0 %v410
        %701 = vmatmul.mubr.bf16.gmra.mrb[0].mxu0 %v409
        %v702 = vpop.f32.mrb[0].mxu0
        %v703 = vadd.f32 %v495, %v702
        %v704 = vpop.f32.mrb[0].mxu0
        %v705 = vpop.f32.mrb[0].mxu0
        %v706 = vadd.f32 %v495, %v705
        %v707 = vpop.f32.mrb[0].mxu0
        %708 = vmatprep.mubr.bf16.mxu0 %v413
        %709 = vmatmul.mubr.bf16.gmra.mrb[0].mxu0 %v412
        %v710 = vpop.f32.mrb[0].mxu0
        %v711 = vadd.f32 %v495, %v710
        %v712 = vpop.f32.mrb[0].mxu0
        %v713 = vpop.f32.mrb[0].mxu0
        %v714 = vadd.f32 %v495, %v713
        %v715 = vpop.f32.mrb[0].mxu0
        %716 = vmatprep.mubr.bf16.mxu0 %v416
        %717 = vmatmul.mubr.bf16.gmra.mrb[0].mxu0 %v415
        %v718 = vpop.f32.mrb[0].mxu0
        %v719 = vadd.f32 %v495, %v718
        %v720 = vpop.f32.mrb[0].mxu0
        %v721 = vpop.f32.mrb[0].mxu0
        %v722 = vadd.f32 %v495, %v721
        %v723 = vpop.f32.mrb[0].mxu0
        %724 = vmatprep.mubr.bf16.mxu0 %v419
        %725 = vmatmul.mubr.bf16.gmra.mrb[0].mxu0 %v418
        %v726 = vpop.f32.mrb[0].mxu0
        %v727 = vadd.f32 %v495, %v726
        %v728 = vpop.f32.mrb[0].mxu0
        %v729 = vpop.f32.mrb[0].mxu0
        %v730 = vadd.f32 %v495, %v729
        %v731 = vpop.f32.mrb[0].mxu0
        %732 = vmatprep.mubr.bf16.mxu0 %v422
        %733 = vmatmul.mubr.bf16.gmra.mrb[0].mxu0 %v421
        %v734 = vpop.f32.mrb[0].mxu0
        %v735 = vadd.f32 %v495, %v734
        %v736 = vpop.f32.mrb[0].mxu0
        %v737 = vpop.f32.mrb[0].mxu0
        %v738 = vadd.f32 %v495, %v737
        %v739 = vpop.f32.mrb[0].mxu0
        %740 = vmatprep.mubr.bf16.mxu0 %v425
        %741 = vmatmul.mubr.bf16.gmra.mrb[0].mxu0 %v424
        %v742 = vpop.f32.mrb[0].mxu0
        %v743 = vadd.f32 %v495, %v742
        %v744 = vpop.f32.mrb[0].mxu0
        %v745 = vpop.f32.mrb[0].mxu0
        %v746 = vadd.f32 %v495, %v745
        %v747 = vpop.f32.mrb[0].mxu0
        %748 = vmatprep.mubr.bf16.mxu0 %v428
        %749 = vmatmul.mubr.bf16.gmra.mrb[0].mxu0 %v427
        %v750 = vpop.f32.mrb[0].mxu0
        %v751 = vadd.f32 %v495, %v750
        %v752 = vpop.f32.mrb[0].mxu0
        %v753 = vpop.f32.mrb[0].mxu0
        %v754 = vadd.f32 %v495, %v753
        %v755 = vpop.f32.mrb[0].mxu0
        %756 = vmatprep.mubr.bf16.mxu0 %v431
        %757 = vmatmul.mubr.bf16.gmra.mrb[0].mxu0 %v430
        %v758 = vpop.f32.mrb[0].mxu0
        %v759 = vadd.f32 %v495, %v758
        %v760 = vpop.f32.mrb[0].mxu0
        %v761 = vpop.f32.mrb[0].mxu0
        %v762 = vadd.f32 %v495, %v761
        %v763 = vpop.f32.mrb[0].mxu0
        %764 = vmatprep.mubr.bf16.mxu0 %v434
        %765 = vmatmul.mubr.bf16.gmra.mrb[0].mxu0 %v433
        %v766 = vpop.f32.mrb[0].mxu0
        %v767 = vadd.f32 %v495, %v766
        %v768 = vpop.f32.mrb[0].mxu0
        %v769 = vpop.f32.mrb[0].mxu0
        %v770 = vadd.f32 %v495, %v769
        %v771 = vpop.f32.mrb[0].mxu0
        %772 = vmatprep.mubr.bf16.mxu0 %v437
        %773 = vmatmul.mubr.bf16.gmra.mrb[0].mxu0 %v436
        %v774 = vpop.f32.mrb[0].mxu0
        %v775 = vadd.f32 %v495, %v774
        %v776 = vpop.f32.mrb[0].mxu0
        %v777 = vpop.f32.mrb[0].mxu0
        %v778 = vadd.f32 %v495, %v777
        %v779 = vpop.f32.mrb[0].mxu0
        %780 = vmatprep.mubr.bf16.mxu0 %v440
        %781 = vmatmul.mubr.bf16.gmra.mrb[0].mxu0 %v439
        %v782 = vpop.f32.mrb[0].mxu0
        %v783 = vadd.f32 %v495, %v782
        %v784 = vpop.f32.mrb[0].mxu0
        %v785 = vpop.f32.mrb[0].mxu0
        %v786 = vadd.f32 %v495, %v785
        %v787 = vpop.f32.mrb[0].mxu0
        %788 = vmatprep.mubr.bf16.mxu0 %v443
        %789 = vmatmul.mubr.bf16.gmra.mrb[0].mxu0 %v442
        %v790 = vpop.f32.mrb[0].mxu0
        %v791 = vadd.f32 %v495, %v790
        %v792 = vpop.f32.mrb[0].mxu0
        %v793 = vpop.f32.mrb[0].mxu0
        %v794 = vadd.f32 %v495, %v793
        %v795 = vpop.f32.mrb[0].mxu0
        %796 = vmatprep.mubr.bf16.mxu0 %v446
        %797 = vmatmul.mubr.bf16.gmra.mrb[0].mxu0 %v445
        %v798 = vpop.f32.mrb[0].mxu0
        %v799 = vadd.f32 %v495, %v798
        %v800 = vpop.f32.mrb[0].mxu0
        %v801 = vpop.f32.mrb[0].mxu0
        %v802 = vadd.f32 %v495, %v801
        %v803 = vpop.f32.mrb[0].mxu0
        %804 = vmatprep.mubr.bf16.mxu0 %v449
        %805 = vmatmul.mubr.bf16.gmra.mrb[0].mxu0 %v448
        %v806 = vpop.f32.mrb[0].mxu0
        %v807 = vadd.f32 %v495, %v806
        %v808 = vpop.f32.mrb[0].mxu0
        %v809 = vpop.f32.mrb[0].mxu0
        %v810 = vadd.f32 %v495, %v809
        %v811 = vpop.f32.mrb[0].mxu0
        %812 = vmatprep.mubr.bf16.mxu0 %v452
        %813 = vmatmul.mubr.bf16.gmra.mrb[0].mxu0 %v451
        %v814 = vpop.f32.mrb[0].mxu0
        %v815 = vadd.f32 %v495, %v814
        %v816 = vpop.f32.mrb[0].mxu0
        %v817 = vpop.f32.mrb[0].mxu0
        %v818 = vadd.f32 %v495, %v817
        %v819 = vpop.f32.mrb[0].mxu0
        %820 = vdwg.mxu0
        %821 = vmatprep.subr.bf16.mxu0 0
        %822 = vmatpush1.bf16.msra.mxu0 %v585
        %823 = vmatprep.subr.bf16.mxu0 0
        %824 = vmatpush1.bf16.msra.mxu0 %v658
        %825 = vmatprep.subr.bf16.mxu0 0
        %826 = vmatpush1.bf16.msra.mxu0 0
        %827 = vmatprep.subr.bf16.mxu0 0
        %828 = vmatpush1.bf16.msra.mxu0 0
        %829 = vmatprep.subr.bf16.mxu0 0
        %830 = vmatpush1.bf16.msra.mxu0 0
        %831 = vmatprep.subr.bf16.mxu0 0
        %832 = vmatpush1.bf16.msra.mxu0 0
        %833 = vmatprep.subr.bf16.mxu0 0
        %834 = vmatpush1.bf16.msra.mxu0 0
        %835 = vmatprep.subr.bf16.mxu0 0
        %836 = vmatpush1.bf16.msra.mxu0 0
        %837 = vmatprep.subr.bf16.mxu0 0
        %838 = vmatpush1.bf16.msra.mxu0 0
        %839 = vmatprep.subr.bf16.mxu0 0
        %840 = vmatpush1.bf16.msra.mxu0 0
        %841 = vmatprep.subr.bf16.mxu0 0
        %842 = vmatpush1.bf16.msra.mxu0 0
        %843 = vmatprep.subr.bf16.mxu0 0
        %844 = vmatpush1.bf16.msra.mxu0 0
        %845 = vmatprep.subr.bf16.mxu0 0
        %846 = vmatpush1.bf16.msra.mxu0 0
        %847 = vmatprep.subr.bf16.mxu0 0
        %848 = vmatpush1.bf16.msra.mxu0 0
        %849 = vmatprep.subr.bf16.mxu0 0
        %850 = vmatpush1.bf16.msra.mxu0 0
        %851 = vmatprep.subr.bf16.mxu0 0
        %852 = vmatpush1.bf16.msra.mxu0 0
        %853 = vmatprep.mubr.bf16.mxu0 0
        %854 = vmatmul.mubr.bf16.gmra.mrb[0].mxu0 %v606
        %v855 = vpop.f32.mrb[0].mxu0
        %v856 = vadd.f32 %v695, %v855
        %v857 = vpop.f32.mrb[0].mxu0
        %v858 = vpop.f32.mrb[0].mxu0
        %v859 = vadd.f32 %v698, %v858
        %v860 = vpop.f32.mrb[0].mxu0
        %861 = vmatprep.mubr.bf16.mxu0 0
        %862 = vmatmul.mubr.bf16.gmra.mrb[0].mxu0 %v609
        %v863 = vpop.f32.mrb[0].mxu0
        %v864 = vadd.f32 %v703, %v863
        %v865 = vpop.f32.mrb[0].mxu0
        %v866 = vpop.f32.mrb[0].mxu0
        %v867 = vadd.f32 %v706, %v866
        %v868 = vpop.f32.mrb[0].mxu0
        %869 = vmatprep.mubr.bf16.mxu0 0
        %870 = vmatmul.mubr.bf16.gmra.mrb[0].mxu0 %v612
        %v871 = vpop.f32.mrb[0].mxu0
        %v872 = vadd.f32 %v711, %v871
        %v873 = vpop.f32.mrb[0].mxu0
        %v874 = vpop.f32.mrb[0].mxu0
        %v875 = vadd.f32 %v714, %v874
        %v876 = vpop.f32.mrb[0].mxu0
        %877 = vmatprep.mubr.bf16.mxu0 0
        %878 = vmatmul.mubr.bf16.gmra.mrb[0].mxu0 %v615
        %v879 = vpop.f32.mrb[0].mxu0
        %v880 = vadd.f32 %v719, %v879
        %v881 = vpop.f32.mrb[0].mxu0
        %v882 = vpop.f32.mrb[0].mxu0
        %v883 = vadd.f32 %v722, %v882
        %v884 = vpop.f32.mrb[0].mxu0
        %885 = vmatprep.mubr.bf16.mxu0 0
        %886 = vmatmul.mubr.bf16.gmra.mrb[0].mxu0 %v618
        %v887 = vpop.f32.mrb[0].mxu0
        %v888 = vadd.f32 %v727, %v887
        %v889 = vpop.f32.mrb[0].mxu0
        %v890 = vpop.f32.mrb[0].mxu0
        %v891 = vadd.f32 %v730, %v890
        %v892 = vpop.f32.mrb[0].mxu0
        %893 = vmatprep.mubr.bf16.mxu0 0
        %894 = vmatmul.mubr.bf16.gmra.mrb[0].mxu0 %v621
        %v895 = vpop.f32.mrb[0].mxu0
        %v896 = vadd.f32 %v735, %v895
        %v897 = vpop.f32.mrb[0].mxu0
        %v898 = vpop.f32.mrb[0].mxu0
        %v899 = vadd.f32 %v738, %v898
        %v900 = vpop.f32.mrb[0].mxu0
        %901 = vmatprep.mubr.bf16.mxu0 0
        %902 = vmatmul.mubr.bf16.gmra.mrb[0].mxu0 %v624
        %v903 = vpop.f32.mrb[0].mxu0
        %v904 = vadd.f32 %v743, %v903
        %v905 = vpop.f32.mrb[0].mxu0
        %v906 = vpop.f32.mrb[0].mxu0
        %v907 = vadd.f32 %v746, %v906
        %v908 = vpop.f32.mrb[0].mxu0
        %909 = vmatprep.mubr.bf16.mxu0 0
        %910 = vmatmul.mubr.bf16.gmra.mrb[0].mxu0 %v627
        %v911 = vpop.f32.mrb[0].mxu0
        %v912 = vadd.f32 %v751, %v911
        %v913 = vpop.f32.mrb[0].mxu0
        %v914 = vpop.f32.mrb[0].mxu0
        %v915 = vadd.f32 %v754, %v914
        %v916 = vpop.f32.mrb[0].mxu0
        %917 = vmatprep.mubr.bf16.mxu0 0
        %918 = vmatmul.mubr.bf16.gmra.mrb[0].mxu0 %v630
        %v919 = vpop.f32.mrb[0].mxu0
        %v920 = vadd.f32 %v759, %v919
        %v921 = vpop.f32.mrb[0].mxu0
        %v922 = vpop.f32.mrb[0].mxu0
        %v923 = vadd.f32 %v762, %v922
        %v924 = vpop.f32.mrb[0].mxu0
        %925 = vmatprep.mubr.bf16.mxu0 0
        %926 = vmatmul.mubr.bf16.gmra.mrb[0].mxu0 %v633
        %v927 = vpop.f32.mrb[0].mxu0
        %v928 = vadd.f32 %v767, %v927
        %v929 = vpop.f32.mrb[0].mxu0
        %v930 = vpop.f32.mrb[0].mxu0
        %v931 = vadd.f32 %v770, %v930
        %v932 = vpop.f32.mrb[0].mxu0
        %933 = vmatprep.mubr.bf16.mxu0 0
        %934 = vmatmul.mubr.bf16.gmra.mrb[0].mxu0 %v636
        %v935 = vpop.f32.mrb[0].mxu0
        %v936 = vadd.f32 %v775, %v935
        %v937 = vpop.f32.mrb[0].mxu0
        %v938 = vpop.f32.mrb[0].mxu0
        %v939 = vadd.f32 %v778, %v938
        %v940 = vpop.f32.mrb[0].mxu0
        %941 = vmatprep.mubr.bf16.mxu0 0
        %942 = vmatmul.mubr.bf16.gmra.mrb[0].mxu0 %v639
        %v943 = vpop.f32.mrb[0].mxu0
        %v944 = vadd.f32 %v783, %v943
        %v945 = vpop.f32.mrb[0].mxu0
        %v946 = vpop.f32.mrb[0].mxu0
        %v947 = vadd.f32 %v786, %v946
        %v948 = vpop.f32.mrb[0].mxu0
        %949 = vmatprep.mubr.bf16.mxu0 0
        %950 = vmatmul.mubr.bf16.gmra.mrb[0].mxu0 %v642
        %v951 = vpop.f32.mrb[0].mxu0
        %v952 = vadd.f32 %v791, %v951
        %v953 = vpop.f32.mrb[0].mxu0
        %v954 = vpop.f32.mrb[0].mxu0
        %v955 = vadd.f32 %v794, %v954
        %v956 = vpop.f32.mrb[0].mxu0
        %957 = vmatprep.mubr.bf16.mxu0 0
        %958 = vmatmul.mubr.bf16.gmra.mrb[0].mxu0 %v645
        %v959 = vpop.f32.mrb[0].mxu0
        %v960 = vadd.f32 %v799, %v959
        %v961 = vpop.f32.mrb[0].mxu0
        %v962 = vpop.f32.mrb[0].mxu0
        %v963 = vadd.f32 %v802, %v962
        %v964 = vpop.f32.mrb[0].mxu0
        %965 = vmatprep.mubr.bf16.mxu0 0
        %966 = vmatmul.mubr.bf16.gmra.mrb[0].mxu0 %v648
        %v967 = vpop.f32.mrb[0].mxu0
        %v968 = vadd.f32 %v807, %v967
        %v969 = vpop.f32.mrb[0].mxu0
        %v970 = vpop.f32.mrb[0].mxu0
        %v971 = vadd.f32 %v810, %v970
        %v972 = vpop.f32.mrb[0].mxu0
        %973 = vmatprep.mubr.bf16.mxu0 0
        %974 = vmatmul.mubr.bf16.gmra.mrb[0].mxu0 %v651
        %v975 = vpop.f32.mrb[0].mxu0
        %v976 = vadd.f32 %v815, %v975
        %v977 = vpop.f32.mrb[0].mxu0
        %v978 = vpop.f32.mrb[0].mxu0
        %v979 = vadd.f32 %v818, %v978
        %v980 = vpop.f32.mrb[0].mxu0
        %981 = vdwg.mxu0
        %v982 = vmax.f32 %v856, 0.0
        %v983 = vmax.f32 %v859, 0.0
        %v984 = vmax.f32 %v864, 0.0
        %v985 = vmax.f32 %v867, 0.0
        %v986 = vmax.f32 %v872, 0.0
        %v987 = vmax.f32 %v875, 0.0
        %v988 = vmax.f32 %v880, 0.0
        %v989 = vmax.f32 %v883, 0.0
        %v990 = vmax.f32 %v888, 0.0
        %v991 = vmax.f32 %v891, 0.0
        %v992 = vmax.f32 %v896, 0.0
        %v993 = vmax.f32 %v899, 0.0
        %v994 = vmax.f32 %v904, 0.0
        %v995 = vmax.f32 %v907, 0.0
        %v996 = vmax.f32 %v912, 0.0
        %v997 = vmax.f32 %v915, 0.0
        %v998 = vmax.f32 %v920, 0.0
        %v999 = vmax.f32 %v923, 0.0
        %v1000 = vmax.f32 %v928, 0.0
        %v1001 = vmax.f32 %v931, 0.0
        %v1002 = vmax.f32 %v936, 0.0
        %v1003 = vmax.f32 %v939, 0.0
        %v1004 = vmax.f32 %v944, 0.0
        %v1005 = vmax.f32 %v947, 0.0
        %v1006 = vmax.f32 %v952, 0.0
        %v1007 = vmax.f32 %v955, 0.0
        %v1008 = vmax.f32 %v960, 0.0
        %v1009 = vmax.f32 %v963, 0.0
        %v1010 = vmax.f32 %v968, 0.0
        %v1011 = vmax.f32 %v971, 0.0
        %v1012 = vmax.f32 %v976, 0.0
        %v1013 = vmax.f32 %v979, 0.0
        %v1014 = vpack.c.bf16 %v983, %v982
        %v1015 = vpack.c.bf16 %v985, %v984
        %v1016 = vpack.c.bf16 %v987, %v986
        %v1017 = vpack.c.bf16 %v989, %v988
        %v1018 = vpack.c.bf16 %v991, %v990
        %v1019 = vpack.c.bf16 %v993, %v992
        %v1020 = vpack.c.bf16 %v995, %v994
        %v1021 = vpack.c.bf16 %v997, %v996
        %v1022 = vpack.c.bf16 %v999, %v998
        %v1023 = vpack.c.bf16 %v1001, %v1000
        %v1024 = vpack.c.bf16 %v1003, %v1002
        %v1025 = vpack.c.bf16 %v1005, %v1004
        %v1026 = vpack.c.bf16 %v1007, %v1006
        %v1027 = vpack.c.bf16 %v1009, %v1008
        %v1028 = vpack.c.bf16 %v1011, %v1010
        %v1029 = vpack.c.bf16 %v1013, %v1012
        %v1030 = vld [vmem:[%s3] sm:$0xf]
        %v1031 = vld [vmem:[%s3 + $0x4] sm:$0xf]
        %v1032 = vld [vmem:[%s3 + $0x8] sm:$0xf]
        %v1033 = vld [vmem:[%s3 + $0xc] sm:$0xf]
        %v1034 = vld [vmem:[%s3 + $0x10] sm:$0xf]
        %v1035 = vld [vmem:[%s3 + $0x14] sm:$0xf]
        %v1036 = vld [vmem:[%s3 + $0x18] sm:$0xf]
        %v1037 = vld [vmem:[%s3 + $0x1c] sm:$0xf]
        %v1038 = vld [vmem:[%s3 + $0x20] sm:$0xf]
        %v1039 = vld [vmem:[%s3 + $0x24] sm:$0xf]
        %v1040 = vld [vmem:[%s3 + $0x28] sm:$0xf]
        %v1041 = vld [vmem:[%s3 + $0x2c] sm:$0xf]
        %v1042 = vld [vmem:[%s3 + $0x30] sm:$0xf]
        %v1043 = vld [vmem:[%s3 + $0x34] sm:$0xf]
        %v1044 = vld [vmem:[%s3 + $0x38] sm:$0xf]
        %v1045 = vld [vmem:[%s3 + $0x3c] sm:$0xf]
        %v1046 = vld [vmem:[%s4] sm:$0x1]
        %v1048 = vlaneseq
        %v1049 = vshrl.u32 %v1048, 7
        %v1050 = vsub.s32 0, %v1049
        %v1051 = vrot.slane %v1046, %v1050
        %v1069 = vunpack.c.l.b16 %v1030
        %v1070 = vunpack.c.l.b16 %v1031
        %v1071 = vunpack.c.l.b16 %v1032
        %v1072 = vunpack.c.l.b16 %v1033
        %v1073 = vunpack.c.l.b16 %v1034
        %v1074 = vunpack.c.l.b16 %v1035
        %v1075 = vunpack.c.l.b16 %v1036
        %v1076 = vunpack.c.l.b16 %v1037
        %v1077 = vunpack.c.l.b16 %v1038
        %v1078 = vunpack.c.l.b16 %v1039
        %v1079 = vunpack.c.l.b16 %v1040
        %v1080 = vunpack.c.l.b16 %v1041
        %v1081 = vunpack.c.l.b16 %v1042
        %v1082 = vunpack.c.l.b16 %v1043
        %v1083 = vunpack.c.l.b16 %v1044
        %v1084 = vunpack.c.l.b16 %v1045
        %v1085 = vpack.c.b16 %v1070, %v1069
        %v1086 = vpack.c.b16 %v1072, %v1071
        %v1087 = vpack.c.b16 %v1074, %v1073
        %v1088 = vpack.c.b16 %v1076, %v1075
        %v1089 = vpack.c.b16 %v1078, %v1077
        %v1090 = vpack.c.b16 %v1080, %v1079
        %v1091 = vpack.c.b16 %v1082, %v1081
        %v1092 = vpack.c.b16 %v1084, %v1083
        %1101 = vmatprep.subr.bf16.mxu0 0
        %1102 = vmatpush1.bf16.msra.mxu0 %v1085
        %1103 = vmatprep.subr.bf16.mxu0 0
        %1104 = vmatpush1.bf16.msra.mxu0 %v1086
        %1105 = vmatprep.subr.bf16.mxu0 0
        %1106 = vmatpush1.bf16.msra.mxu0 %v1087
        %1107 = vmatprep.subr.bf16.mxu0 0
        %1108 = vmatpush1.bf16.msra.mxu0 %v1088
        %1109 = vmatprep.subr.bf16.mxu0 0
        %1110 = vmatpush1.bf16.msra.mxu0 %v1089
        %1111 = vmatprep.subr.bf16.mxu0 0
        %1112 = vmatpush1.bf16.msra.mxu0 %v1090
        %1113 = vmatprep.subr.bf16.mxu0 0
        %1114 = vmatpush1.bf16.msra.mxu0 %v1091
        %1115 = vmatprep.subr.bf16.mxu0 0
        %1116 = vmatpush1.bf16.msra.mxu0 %v1092
        %1117 = vmatprep.subr.bf16.mxu0 0
        %1118 = vmatpush1.bf16.msra.mxu0 0
        %1119 = vmatprep.subr.bf16.mxu0 0
        %1120 = vmatpush1.bf16.msra.mxu0 0
        %1121 = vmatprep.subr.bf16.mxu0 0
        %1122 = vmatpush1.bf16.msra.mxu0 0
        %1123 = vmatprep.subr.bf16.mxu0 0
        %1124 = vmatpush1.bf16.msra.mxu0 0
        %1125 = vmatprep.subr.bf16.mxu0 0
        %1126 = vmatpush1.bf16.msra.mxu0 0
        %1127 = vmatprep.subr.bf16.mxu0 0
        %1128 = vmatpush1.bf16.msra.mxu0 0
        %1129 = vmatprep.subr.bf16.mxu0 0
        %1130 = vmatpush1.bf16.msra.mxu0 0
        %1131 = vmatprep.subr.bf16.mxu0 0
        %1132 = vmatpush1.bf16.msra.mxu0 0
        %1133 = vmatprep.mubr.bf16.mxu0 0
        %1134 = vmatmul.mubr.bf16.gmra.mrb[0].mxu0 %v1014
        %v1135 = vpop.f32.mrb[0].mxu0
        %v1136 = vadd.f32 %v1051, %v1135
        %v1137 = vpop.f32.mrb[0].mxu0
        %v1138 = vpop.f32.mrb[0].mxu0
        %v1139 = vadd.f32 %v1051, %v1138
        %v1140 = vpop.f32.mrb[0].mxu0
        %1141 = vmatprep.mubr.bf16.mxu0 0
        %1142 = vmatmul.mubr.bf16.gmra.mrb[0].mxu0 %v1015
        %v1143 = vpop.f32.mrb[0].mxu0
        %v1144 = vadd.f32 %v1051, %v1143
        %v1145 = vpop.f32.mrb[0].mxu0
        %v1146 = vpop.f32.mrb[0].mxu0
        %v1147 = vadd.f32 %v1051, %v1146
        %v1148 = vpop.f32.mrb[0].mxu0
        %1149 = vmatprep.mubr.bf16.mxu0 0
        %1150 = vmatmul.mubr.bf16.gmra.mrb[0].mxu0 %v1016
        %v1151 = vpop.f32.mrb[0].mxu0
        %v1152 = vadd.f32 %v1051, %v1151
        %v1153 = vpop.f32.mrb[0].mxu0
        %v1154 = vpop.f32.mrb[0].mxu0
        %v1155 = vadd.f32 %v1051, %v1154
        %v1156 = vpop.f32.mrb[0].mxu0
        %1157 = vmatprep.mubr.bf16.mxu0 0
        %1158 = vmatmul.mubr.bf16.gmra.mrb[0].mxu0 %v1017
        %v1159 = vpop.f32.mrb[0].mxu0
        %v1160 = vadd.f32 %v1051, %v1159
        %v1161 = vpop.f32.mrb[0].mxu0
        %v1162 = vpop.f32.mrb[0].mxu0
        %v1163 = vadd.f32 %v1051, %v1162
        %v1164 = vpop.f32.mrb[0].mxu0
        %1165 = vmatprep.mubr.bf16.mxu0 0
        %1166 = vmatmul.mubr.bf16.gmra.mrb[0].mxu0 %v1018
        %v1167 = vpop.f32.mrb[0].mxu0
        %v1168 = vadd.f32 %v1051, %v1167
        %v1169 = vpop.f32.mrb[0].mxu0
        %v1170 = vpop.f32.mrb[0].mxu0
        %v1171 = vadd.f32 %v1051, %v1170
        %v1172 = vpop.f32.mrb[0].mxu0
        %1173 = vmatprep.mubr.bf16.mxu0 0
        %1174 = vmatmul.mubr.bf16.gmra.mrb[0].mxu0 %v1019
        %v1175 = vpop.f32.mrb[0].mxu0
        %v1176 = vadd.f32 %v1051, %v1175
        %v1177 = vpop.f32.mrb[0].mxu0
        %v1178 = vpop.f32.mrb[0].mxu0
        %v1179 = vadd.f32 %v1051, %v1178
        %v1180 = vpop.f32.mrb[0].mxu0
        %1181 = vmatprep.mubr.bf16.mxu0 0
        %1182 = vmatmul.mubr.bf16.gmra.mrb[0].mxu0 %v1020
        %v1183 = vpop.f32.mrb[0].mxu0
        %v1184 = vadd.f32 %v1051, %v1183
        %v1185 = vpop.f32.mrb[0].mxu0
        %v1186 = vpop.f32.mrb[0].mxu0
        %v1187 = vadd.f32 %v1051, %v1186
        %v1188 = vpop.f32.mrb[0].mxu0
        %1189 = vmatprep.mubr.bf16.mxu0 0
        %1190 = vmatmul.mubr.bf16.gmra.mrb[0].mxu0 %v1021
        %v1191 = vpop.f32.mrb[0].mxu0
        %v1192 = vadd.f32 %v1051, %v1191
        %v1193 = vpop.f32.mrb[0].mxu0
        %v1194 = vpop.f32.mrb[0].mxu0
        %v1195 = vadd.f32 %v1051, %v1194
        %v1196 = vpop.f32.mrb[0].mxu0
        %1197 = vmatprep.mubr.bf16.mxu0 0
        %1198 = vmatmul.mubr.bf16.gmra.mrb[0].mxu0 %v1022
        %v1199 = vpop.f32.mrb[0].mxu0
        %v1200 = vadd.f32 %v1051, %v1199
        %v1201 = vpop.f32.mrb[0].mxu0
        %v1202 = vpop.f32.mrb[0].mxu0
        %v1203 = vadd.f32 %v1051, %v1202
        %v1204 = vpop.f32.mrb[0].mxu0
        %1205 = vmatprep.mubr.bf16.mxu0 0
        %1206 = vmatmul.mubr.bf16.gmra.mrb[0].mxu0 %v1023
        %v1207 = vpop.f32.mrb[0].mxu0
        %v1208 = vadd.f32 %v1051, %v1207
        %v1209 = vpop.f32.mrb[0].mxu0
        %v1210 = vpop.f32.mrb[0].mxu0
        %v1211 = vadd.f32 %v1051, %v1210
        %v1212 = vpop.f32.mrb[0].mxu0
        %1213 = vmatprep.mubr.bf16.mxu0 0
        %1214 = vmatmul.mubr.bf16.gmra.mrb[0].mxu0 %v1024
        %v1215 = vpop.f32.mrb[0].mxu0
        %v1216 = vadd.f32 %v1051, %v1215
        %v1217 = vpop.f32.mrb[0].mxu0
        %v1218 = vpop.f32.mrb[0].mxu0
        %v1219 = vadd.f32 %v1051, %v1218
        %v1220 = vpop.f32.mrb[0].mxu0
        %1221 = vmatprep.mubr.bf16.mxu0 0
        %1222 = vmatmul.mubr.bf16.gmra.mrb[0].mxu0 %v1025
        %v1223 = vpop.f32.mrb[0].mxu0
        %v1224 = vadd.f32 %v1051, %v1223
        %v1225 = vpop.f32.mrb[0].mxu0
        %v1226 = vpop.f32.mrb[0].mxu0
        %v1227 = vadd.f32 %v1051, %v1226
        %v1228 = vpop.f32.mrb[0].mxu0
        %1229 = vmatprep.mubr.bf16.mxu0 0
        %1230 = vmatmul.mubr.bf16.gmra.mrb[0].mxu0 %v1026
        %v1231 = vpop.f32.mrb[0].mxu0
        %v1232 = vadd.f32 %v1051, %v1231
        %v1233 = vpop.f32.mrb[0].mxu0
        %v1234 = vpop.f32.mrb[0].mxu0
        %v1235 = vadd.f32 %v1051, %v1234
        %v1236 = vpop.f32.mrb[0].mxu0
        %1237 = vmatprep.mubr.bf16.mxu0 0
        %1238 = vmatmul.mubr.bf16.gmra.mrb[0].mxu0 %v1027
        %v1239 = vpop.f32.mrb[0].mxu0
        %v1240 = vadd.f32 %v1051, %v1239
        %v1241 = vpop.f32.mrb[0].mxu0
        %v1242 = vpop.f32.mrb[0].mxu0
        %v1243 = vadd.f32 %v1051, %v1242
        %v1244 = vpop.f32.mrb[0].mxu0
        %1245 = vmatprep.mubr.bf16.mxu0 0
        %1246 = vmatmul.mubr.bf16.gmra.mrb[0].mxu0 %v1028
        %v1247 = vpop.f32.mrb[0].mxu0
        %v1248 = vadd.f32 %v1051, %v1247
        %v1249 = vpop.f32.mrb[0].mxu0
        %v1250 = vpop.f32.mrb[0].mxu0
        %v1251 = vadd.f32 %v1051, %v1250
        %v1252 = vpop.f32.mrb[0].mxu0
        %1253 = vmatprep.mubr.bf16.mxu0 0
        %1254 = vmatmul.mubr.bf16.gmra.mrb[0].mxu0 %v1029
        %v1255 = vpop.f32.mrb[0].mxu0
        %v1256 = vadd.f32 %v1051, %v1255
        %v1257 = vpop.f32.mrb[0].mxu0
        %v1258 = vpop.f32.mrb[0].mxu0
        %v1259 = vadd.f32 %v1051, %v1258
        %v1260 = vpop.f32.mrb[0].mxu0
        %1261 = vdwg.mxu0
        %v1262 = vmax.f32 %v1136, 0.0
        %v1263 = vmax.f32 %v1139, 0.0
        %v1264 = vmax.f32 %v1144, 0.0
        %v1265 = vmax.f32 %v1147, 0.0
        %v1266 = vmax.f32 %v1152, 0.0
        %v1267 = vmax.f32 %v1155, 0.0
        %v1268 = vmax.f32 %v1160, 0.0
        %v1269 = vmax.f32 %v1163, 0.0
        %v1270 = vmax.f32 %v1168, 0.0
        %v1271 = vmax.f32 %v1171, 0.0
        %v1272 = vmax.f32 %v1176, 0.0
        %v1273 = vmax.f32 %v1179, 0.0
        %v1274 = vmax.f32 %v1184, 0.0
        %v1275 = vmax.f32 %v1187, 0.0
        %v1276 = vmax.f32 %v1192, 0.0
        %v1277 = vmax.f32 %v1195, 0.0
        %v1278 = vmax.f32 %v1200, 0.0
        %v1279 = vmax.f32 %v1203, 0.0
        %v1280 = vmax.f32 %v1208, 0.0
        %v1281 = vmax.f32 %v1211, 0.0
        %v1282 = vmax.f32 %v1216, 0.0
        %v1283 = vmax.f32 %v1219, 0.0
        %v1284 = vmax.f32 %v1224, 0.0
        %v1285 = vmax.f32 %v1227, 0.0
        %v1286 = vmax.f32 %v1232, 0.0
        %v1287 = vmax.f32 %v1235, 0.0
        %v1288 = vmax.f32 %v1240, 0.0
        %v1289 = vmax.f32 %v1243, 0.0
        %v1290 = vmax.f32 %v1248, 0.0
        %v1291 = vmax.f32 %v1251, 0.0
        %v1292 = vmax.f32 %v1256, 0.0
        %v1293 = vmax.f32 %v1259, 0.0
        %v1294 = vld [vmem:[%s5] sm:$0x1]
        %v1296 = vlaneseq
        %v1297 = vshrl.u32 %v1296, 7
        %v1298 = vsub.s32 0, %v1297
        %v1299 = vrot.slane %v1294, %v1298
        %v1301 = vmul.f32 %v1262, %v1299
        %v1302 = vmul.f32 %v1263, %v1299
        %v1303 = vmul.f32 %v1264, %v1299
        %v1304 = vmul.f32 %v1265, %v1299
        %v1305 = vmul.f32 %v1266, %v1299
        %v1306 = vmul.f32 %v1267, %v1299
        %v1307 = vmul.f32 %v1268, %v1299
        %v1308 = vmul.f32 %v1269, %v1299
        %v1309 = vmul.f32 %v1270, %v1299
        %v1310 = vmul.f32 %v1271, %v1299
        %v1311 = vmul.f32 %v1272, %v1299
        %v1312 = vmul.f32 %v1273, %v1299
        %v1313 = vmul.f32 %v1274, %v1299
        %v1314 = vmul.f32 %v1275, %v1299
        %v1315 = vmul.f32 %v1276, %v1299
        %v1316 = vmul.f32 %v1277, %v1299
        %v1317 = vmul.f32 %v1278, %v1299
        %v1318 = vmul.f32 %v1279, %v1299
        %v1319 = vmul.f32 %v1280, %v1299
        %v1320 = vmul.f32 %v1281, %v1299
        %v1321 = vmul.f32 %v1282, %v1299
        %v1322 = vmul.f32 %v1283, %v1299
        %v1323 = vmul.f32 %v1284, %v1299
        %v1324 = vmul.f32 %v1285, %v1299
        %v1325 = vmul.f32 %v1286, %v1299
        %v1326 = vmul.f32 %v1287, %v1299
        %v1327 = vmul.f32 %v1288, %v1299
        %v1328 = vmul.f32 %v1289, %v1299
        %v1329 = vmul.f32 %v1290, %v1299
        %v1330 = vmul.f32 %v1291, %v1299
        %v1331 = vmul.f32 %v1292, %v1299
        %v1332 = vmul.f32 %v1293, %v1299
        %1333 = vadd.xlane.f32.xlu0 %v1301
        %v1334 = vpop.xlane.xlu0 %1333
        %1335 = vadd.xlane.f32.xlu0 %v1302
        %v1336 = vpop.xlane.xlu0 %1335
        %1337 = vadd.xlane.f32.xlu0 %v1303
        %v1338 = vpop.xlane.xlu0 %1337
        %1339 = vadd.xlane.f32.xlu0 %v1304
        %v1340 = vpop.xlane.xlu0 %1339
        %1341 = vadd.xlane.f32.xlu0 %v1305
        %v1342 = vpop.xlane.xlu0 %1341
        %1343 = vadd.xlane.f32.xlu0 %v1306
        %v1344 = vpop.xlane.xlu0 %1343
        %1345 = vadd.xlane.f32.xlu0 %v1307
        %v1346 = vpop.xlane.xlu0 %1345
        %1347 = vadd.xlane.f32.xlu0 %v1308
        %v1348 = vpop.xlane.xlu0 %1347
        %1349 = vadd.xlane.f32.xlu0 %v1309
        %v1350 = vpop.xlane.xlu0 %1349
        %1351 = vadd.xlane.f32.xlu0 %v1310
        %v1352 = vpop.xlane.xlu0 %1351
        %1353 = vadd.xlane.f32.xlu0 %v1311
        %v1354 = vpop.xlane.xlu0 %1353
        %1355 = vadd.xlane.f32.xlu0 %v1312
        %v1356 = vpop.xlane.xlu0 %1355
        %1357 = vadd.xlane.f32.xlu0 %v1313
        %v1358 = vpop.xlane.xlu0 %1357
        %1359 = vadd.xlane.f32.xlu0 %v1314
        %v1360 = vpop.xlane.xlu0 %1359
        %1361 = vadd.xlane.f32.xlu0 %v1315
        %v1362 = vpop.xlane.xlu0 %1361
        %1363 = vadd.xlane.f32.xlu0 %v1316
        %v1364 = vpop.xlane.xlu0 %1363
        %1365 = vadd.xlane.f32.xlu0 %v1317
        %v1366 = vpop.xlane.xlu0 %1365
        %1367 = vadd.xlane.f32.xlu0 %v1318
        %v1368 = vpop.xlane.xlu0 %1367
        %1369 = vadd.xlane.f32.xlu0 %v1319
        %v1370 = vpop.xlane.xlu0 %1369
        %1371 = vadd.xlane.f32.xlu0 %v1320
        %v1372 = vpop.xlane.xlu0 %1371
        %1373 = vadd.xlane.f32.xlu0 %v1321
        %v1374 = vpop.xlane.xlu0 %1373
        %1375 = vadd.xlane.f32.xlu0 %v1322
        %v1376 = vpop.xlane.xlu0 %1375
        %1377 = vadd.xlane.f32.xlu0 %v1323
        %v1378 = vpop.xlane.xlu0 %1377
        %1379 = vadd.xlane.f32.xlu0 %v1324
        %v1380 = vpop.xlane.xlu0 %1379
        %1381 = vadd.xlane.f32.xlu0 %v1325
        %v1382 = vpop.xlane.xlu0 %1381
        %1383 = vadd.xlane.f32.xlu0 %v1326
        %v1384 = vpop.xlane.xlu0 %1383
        %1385 = vadd.xlane.f32.xlu0 %v1327
        %v1386 = vpop.xlane.xlu0 %1385
        %1387 = vadd.xlane.f32.xlu0 %v1328
        %v1388 = vpop.xlane.xlu0 %1387
        %1389 = vadd.xlane.f32.xlu0 %v1329
        %v1390 = vpop.xlane.xlu0 %1389
        %1391 = vadd.xlane.f32.xlu0 %v1330
        %v1392 = vpop.xlane.xlu0 %1391
        %1393 = vadd.xlane.f32.xlu0 %v1331
        %v1394 = vpop.xlane.xlu0 %1393
        %1395 = vadd.xlane.f32.xlu0 %v1332
        %v1396 = vpop.xlane.xlu0 %1395
        %s1397 = sld [smem:[#allocation2]]
        %v1398 = vstv %s1397
        %v1399 = vadd.f32 %v1334, %v1398
        %v1400 = vadd.f32 %v1336, %v1398
        %v1401 = vadd.f32 %v1338, %v1398
        %v1402 = vadd.f32 %v1340, %v1398
        %v1403 = vadd.f32 %v1342, %v1398
        %v1404 = vadd.f32 %v1344, %v1398
        %v1405 = vadd.f32 %v1346, %v1398
        %v1406 = vadd.f32 %v1348, %v1398
        %v1407 = vadd.f32 %v1350, %v1398
        %v1408 = vadd.f32 %v1352, %v1398
        %v1409 = vadd.f32 %v1354, %v1398
        %v1410 = vadd.f32 %v1356, %v1398
        %v1411 = vadd.f32 %v1358, %v1398
        %v1412 = vadd.f32 %v1360, %v1398
        %v1413 = vadd.f32 %v1362, %v1398
        %v1414 = vadd.f32 %v1364, %v1398
        %v1415 = vadd.f32 %v1366, %v1398
        %v1416 = vadd.f32 %v1368, %v1398
        %v1417 = vadd.f32 %v1370, %v1398
        %v1418 = vadd.f32 %v1372, %v1398
        %v1419 = vadd.f32 %v1374, %v1398
        %v1420 = vadd.f32 %v1376, %v1398
        %v1421 = vadd.f32 %v1378, %v1398
        %v1422 = vadd.f32 %v1380, %v1398
        %v1423 = vadd.f32 %v1382, %v1398
        %v1424 = vadd.f32 %v1384, %v1398
        %v1425 = vadd.f32 %v1386, %v1398
        %v1426 = vadd.f32 %v1388, %v1398
        %v1427 = vadd.f32 %v1390, %v1398
        %v1428 = vadd.f32 %v1392, %v1398
        %v1429 = vadd.f32 %v1394, %v1398
        %v1430 = vadd.f32 %v1396, %v1398
        %vm1431 = vcmask 7168
        %1432 = vst.msk [vmem:[%s286] sm:$0xff] %vm1431, %v1399
        %1433 = vst.msk [vmem:[%s286 + $0x8] sm:$0xff] %vm1431, %v1400
        %1434 = vst.msk [vmem:[%s286 + $0x10] sm:$0xff] %vm1431, %v1401
        %1435 = vst.msk [vmem:[%s286 + $0x18] sm:$0xff] %vm1431, %v1402
        %1436 = vst.msk [vmem:[%s286 + $0x20] sm:$0xff] %vm1431, %v1403
        %1437 = vst.msk [vmem:[%s286 + $0x28] sm:$0xff] %vm1431, %v1404
        %1438 = vst.msk [vmem:[%s286 + $0x30] sm:$0xff] %vm1431, %v1405
        %1439 = vst.msk [vmem:[%s286 + $0x38] sm:$0xff] %vm1431, %v1406
        %1440 = vst.msk [vmem:[%s286 + $0x40] sm:$0xff] %vm1431, %v1407
        %1441 = vst.msk [vmem:[%s286 + $0x48] sm:$0xff] %vm1431, %v1408
        %1442 = vst.msk [vmem:[%s286 + $0x50] sm:$0xff] %vm1431, %v1409
        %1443 = vst.msk [vmem:[%s286 + $0x58] sm:$0xff] %vm1431, %v1410
        %1444 = vst.msk [vmem:[%s286 + $0x60] sm:$0xff] %vm1431, %v1411
        %1445 = vst.msk [vmem:[%s286 + $0x68] sm:$0xff] %vm1431, %v1412
        %1446 = vst.msk [vmem:[%s286 + $0x70] sm:$0xff] %vm1431, %v1413
        %1447 = vst.msk [vmem:[%s286 + $0x78] sm:$0xff] %vm1431, %v1414
        %1448 = vst.msk [vmem:[%s286 + $0x80] sm:$0xff] %vm1431, %v1415
        %1449 = vst.msk [vmem:[%s286 + $0x88] sm:$0xff] %vm1431, %v1416
        %1450 = vst.msk [vmem:[%s286 + $0x90] sm:$0xff] %vm1431, %v1417
        %1451 = vst.msk [vmem:[%s286 + $0x98] sm:$0xff] %vm1431, %v1418
        %1452 = vst.msk [vmem:[%s286 + $0xa0] sm:$0xff] %vm1431, %v1419
        %1453 = vst.msk [vmem:[%s286 + $0xa8] sm:$0xff] %vm1431, %v1420
        %1454 = vst.msk [vmem:[%s286 + $0xb0] sm:$0xff] %vm1431, %v1421
        %1455 = vst.msk [vmem:[%s286 + $0xb8] sm:$0xff] %vm1431, %v1422
        %1456 = vst.msk [vmem:[%s286 + $0xc0] sm:$0xff] %vm1431, %v1423
        %1457 = vst.msk [vmem:[%s286 + $0xc8] sm:$0xff] %vm1431, %v1424
        %1458 = vst.msk [vmem:[%s286 + $0xd0] sm:$0xff] %vm1431, %v1425
        %1459 = vst.msk [vmem:[%s286 + $0xd8] sm:$0xff] %vm1431, %v1426
        %1460 = vst.msk [vmem:[%s286 + $0xe0] sm:$0xff] %vm1431, %v1427
        %1461 = vst.msk [vmem:[%s286 + $0xe8] sm:$0xff] %vm1431, %v1428
        %1462 = vst.msk [vmem:[%s286 + $0xf0] sm:$0xff] %vm1431, %v1429
        %1463 = vst.msk [vmem:[%s286 + $0xf8] sm:$0xff] %vm1431, %v1430
        %s1464 = sand.u32 %s179, 1
        %s1465 = sand.u32 %s179, 1
        %s1466 = smul.addr %s1465, 256
        %s1467 = scalar_lea.vmem [#allocation3], %s1466
        // Predicated region
        $region49: #{tpu_custom_call.1} parent=47 // pred_check
          %p1468 = pneg %p189
        $region50: #{tpu_custom_call.1} parent=47 // pred_check_branch
          %1470 = sbr.rel (%p1468) target = $region52
        $region51: #{tpu_custom_call.1} parent=47 // pred_region
          %s1471 = smul.u32 32, %s19
          %s1472 = ssub.s32 38, %s1471
          %p1473 = scmp.lt.s32.totalorder %s1472, 32
          %s1474 = scalar_select %p1473, %s1472, 32
          %s1475 = smul.u32 128, %s1474
          %p1476 = scmp.ne.s32.totalorder 0, %s1475
          %s1477 = smul.addr %s1471, 8
          %s1478 = scalar_lea.vmem %s7, %s1477
          // Predicated region
          $region53: #{tpu_custom_call.1} parent=51 // pred_check
            %p1479 = pneg %p1476
          $region54: #{tpu_custom_call.1} parent=51 // pred_check_branch
            %1481 = sbr.rel (%p1479) target = $region56
          $region55: #{tpu_custom_call.1} parent=51 // pred_region
            // Predicated region
            $region57: #{tpu_custom_call.1} parent=55 // pred_check
              _
            $region58: #{tpu_custom_call.1} parent=55 // pred_check_branch
              %1483 = sbr.rel (0) target = $region60
            $region59: #{tpu_custom_call.1} parent=55 // pred_region
              // Predicated region
              $region79: #{tpu_custom_call.1} parent=59 // pred_check
                _
              $region80: #{tpu_custom_call.1} parent=59 // pred_check_branch
                %1594 = sbr.rel (0) target = $region82
              $region81: #{tpu_custom_call.1} parent=59 // pred_region
                %s1595 = sshrl.u32 %s1474, 5
                // While loop
                $region83: #{tpu_custom_call.1} parent=81 // loop_pre_header
                  _
                $region84: #{tpu_custom_call.1} parent=81 // loop_header
                  %s1597 = sphi 0, %s1599
                  %p1598 = scmp.ge.s32.totalorder %s1597, %s1595
                  %s1602 = sphi 0, %s1671
                  %s1603 = sphi %s1467, %s1674
                  %s1604 = sphi %s1478, %s1675
                $region85: #{tpu_custom_call.1} parent=81 // loop_header_branch
                  %1601 = sbr.rel (%p1598) target = $region89
                $region86: #{tpu_custom_call.1} parent=81 // loop_body
                  %v1605 = vld [vmem:[%s1603] sm:$0xff]
                  %1606 = vst [vmem:[%s1604] sm:$0xff] %v1605
                  %v1607 = vld [vmem:[%s1603 + $0x8] sm:$0xff]
                  %1608 = vst [vmem:[%s1604 + $0x8] sm:$0xff] %v1607
                  %v1609 = vld [vmem:[%s1603 + $0x10] sm:$0xff]
                  %1610 = vst [vmem:[%s1604 + $0x10] sm:$0xff] %v1609
                  %v1611 = vld [vmem:[%s1603 + $0x18] sm:$0xff]
                  %1612 = vst [vmem:[%s1604 + $0x18] sm:$0xff] %v1611
                  %v1613 = vld [vmem:[%s1603 + $0x20] sm:$0xff]
                  %1614 = vst [vmem:[%s1604 + $0x20] sm:$0xff] %v1613
                  %v1615 = vld [vmem:[%s1603 + $0x28] sm:$0xff]
                  %1616 = vst [vmem:[%s1604 + $0x28] sm:$0xff] %v1615
                  %v1617 = vld [vmem:[%s1603 + $0x30] sm:$0xff]
                  %1618 = vst [vmem:[%s1604 + $0x30] sm:$0xff] %v1617
                  %v1619 = vld [vmem:[%s1603 + $0x38] sm:$0xff]
                  %1620 = vst [vmem:[%s1604 + $0x38] sm:$0xff] %v1619
                  %v1621 = vld [vmem:[%s1603 + $0x40] sm:$0xff]
                  %1622 = vst [vmem:[%s1604 + $0x40] sm:$0xff] %v1621
                  %v1623 = vld [vmem:[%s1603 + $0x48] sm:$0xff]
                  %1624 = vst [vmem:[%s1604 + $0x48] sm:$0xff] %v1623
                  %v1625 = vld [vmem:[%s1603 + $0x50] sm:$0xff]
                  %1626 = vst [vmem:[%s1604 + $0x50] sm:$0xff] %v1625
                  %v1627 = vld [vmem:[%s1603 + $0x58] sm:$0xff]
                  %1628 = vst [vmem:[%s1604 + $0x58] sm:$0xff] %v1627
                  %v1629 = vld [vmem:[%s1603 + $0x60] sm:$0xff]
                  %1630 = vst [vmem:[%s1604 + $0x60] sm:$0xff] %v1629
                  %v1631 = vld [vmem:[%s1603 + $0x68] sm:$0xff]
                  %1632 = vst [vmem:[%s1604 + $0x68] sm:$0xff] %v1631
                  %v1633 = vld [vmem:[%s1603 + $0x70] sm:$0xff]
                  %1634 = vst [vmem:[%s1604 + $0x70] sm:$0xff] %v1633
                  %v1635 = vld [vmem:[%s1603 + $0x78] sm:$0xff]
                  %1636 = vst [vmem:[%s1604 + $0x78] sm:$0xff] %v1635
                  %v1637 = vld [vmem:[%s1603 + $0x80] sm:$0xff]
                  %1638 = vst [vmem:[%s1604 + $0x80] sm:$0xff] %v1637
                  %v1639 = vld [vmem:[%s1603 + $0x88] sm:$0xff]
                  %1640 = vst [vmem:[%s1604 + $0x88] sm:$0xff] %v1639
                  %v1641 = vld [vmem:[%s1603 + $0x90] sm:$0xff]
                  %1642 = vst [vmem:[%s1604 + $0x90] sm:$0xff] %v1641
                  %v1643 = vld [vmem:[%s1603 + $0x98] sm:$0xff]
                  %1644 = vst [vmem:[%s1604 + $0x98] sm:$0xff] %v1643
                  %v1645 = vld [vmem:[%s1603 + $0xa0] sm:$0xff]
                  %1646 = vst [vmem:[%s1604 + $0xa0] sm:$0xff] %v1645
                  %v1647 = vld [vmem:[%s1603 + $0xa8] sm:$0xff]
                  %1648 = vst [vmem:[%s1604 + $0xa8] sm:$0xff] %v1647
                  %v1649 = vld [vmem:[%s1603 + $0xb0] sm:$0xff]
                  %1650 = vst [vmem:[%s1604 + $0xb0] sm:$0xff] %v1649
                  %v1651 = vld [vmem:[%s1603 + $0xb8] sm:$0xff]
                  %1652 = vst [vmem:[%s1604 + $0xb8] sm:$0xff] %v1651
                  %v1653 = vld [vmem:[%s1603 + $0xc0] sm:$0xff]
                  %1654 = vst [vmem:[%s1604 + $0xc0] sm:$0xff] %v1653
                  %v1655 = vld [vmem:[%s1603 + $0xc8] sm:$0xff]
                  %1656 = vst [vmem:[%s1604 + $0xc8] sm:$0xff] %v1655
                  %v1657 = vld [vmem:[%s1603 + $0xd0] sm:$0xff]
                  %1658 = vst [vmem:[%s1604 + $0xd0] sm:$0xff] %v1657
                  %v1659 = vld [vmem:[%s1603 + $0xd8] sm:$0xff]
                  %1660 = vst [vmem:[%s1604 + $0xd8] sm:$0xff] %v1659
                  %v1661 = vld [vmem:[%s1603 + $0xe0] sm:$0xff]
                  %1662 = vst [vmem:[%s1604 + $0xe0] sm:$0xff] %v1661
                  %v1663 = vld [vmem:[%s1603 + $0xe8] sm:$0xff]
                  %1664 = vst [vmem:[%s1604 + $0xe8] sm:$0xff] %v1663
                  %v1665 = vld [vmem:[%s1603 + $0xf0] sm:$0xff]
                  %1666 = vst [vmem:[%s1604 + $0xf0] sm:$0xff] %v1665
                  %v1667 = vld [vmem:[%s1603 + $0xf8] sm:$0xff]
                  %1668 = vst [vmem:[%s1604 + $0xf8] sm:$0xff] %v1667
                  %s1669 = sadd.s32 1, %s1602
                  %p1670 = scmp.ge.s32.totalorder %s1669, %s1595
                  %s1671 = scalar_select %p1670, 0, %s1669
                  %s1672 = smul.u32 %s1671, 256
                  %s1673 = smul.u32 %s1671, 256
                  %s1674 = scalar_lea.vmem %s1467, %s1672 [#allocation3]
                  %s1675 = scalar_lea.vmem %s1478, %s1673
                $region87: #{tpu_custom_call.1} parent=81 // loop_footer
                  %s1599 = sadd.s32 %s1597, 1
                $region88: #{tpu_custom_call.1} parent=81 // loop_footer_branch
                  %1596 = sbr.rel target = $region84
                $region89: #{tpu_custom_call.1} parent=81 // loop_exit
                  _
                %s1676 = sshrl.u32 %s1474, 5
                %s1677 = sand.u32 %s1474, 31
                %s1678 = smul.u32 %s1676, 32
                %s1679 = smul.u32 8, %s1678
                %s1680 = scalar_lea.vmem %s1467, %s1679 [#allocation3]
                %s1681 = smul.u32 8, %s1678
                %s1682 = scalar_lea.vmem %s1478, %s1681
                // While loop
                $region90: #{tpu_custom_call.1} parent=81 // loop_pre_header
                  _
                $region91: #{tpu_custom_call.1} parent=81 // loop_header
                  %s1684 = sphi 0, %s1686
                  %p1685 = scmp.ge.s32.totalorder %s1684, %s1677
                  %s1689 = sphi 0, %s1696
                  %s1690 = sphi %s1680, %s1699
                  %s1691 = sphi %s1682, %s1700
                $region92: #{tpu_custom_call.1} parent=81 // loop_header_branch
                  %1688 = sbr.rel (%p1685) target = $region96
                $region93: #{tpu_custom_call.1} parent=81 // loop_body
                  %v1692 = vld [vmem:[%s1690] sm:$0xff]
                  %1693 = vst [vmem:[%s1691] sm:$0xff] %v1692
                  %s1694 = sadd.s32 1, %s1689
                  %p1695 = scmp.ge.s32.totalorder %s1694, %s1677
                  %s1696 = scalar_select %p1695, 0, %s1694
                  %s1697 = smul.u32 %s1696, 8
                  %s1698 = smul.u32 %s1696, 8
                  %s1699 = scalar_lea.vmem %s1680, %s1697 [#allocation3]
                  %s1700 = scalar_lea.vmem %s1682, %s1698
                $region94: #{tpu_custom_call.1} parent=81 // loop_footer
                  %s1686 = sadd.s32 %s1684, 1
                $region95: #{tpu_custom_call.1} parent=81 // loop_footer_branch
                  %1683 = sbr.rel target = $region91
                $region96: #{tpu_custom_call.1} parent=81 // loop_exit
                  _
              $region82: #{tpu_custom_call.1} parent=59 // pred_fallthru
                _
              // Predicated region
              $region97: #{tpu_custom_call.1} parent=59 // pred_check
                _
              $region98: #{tpu_custom_call.1} parent=59 // pred_check_branch
                %1702 = sbr.rel target = $region100
              $region99: #{tpu_custom_call.1} parent=59 // pred_region
                _
              $region100: #{tpu_custom_call.1} parent=59 // pred_fallthru
                _
            $region60: #{tpu_custom_call.1} parent=55 // pred_fallthru
              _
            // Predicated region
            $region61: #{tpu_custom_call.1} parent=55 // pred_check
              _
            $region62: #{tpu_custom_call.1} parent=55 // pred_check_branch
              %1485 = sbr.rel target = $region64
            $region63: #{tpu_custom_call.1} parent=55 // pred_region
              %s1487 = sshrl.u32 %s1474, 5
              // While loop
              $region65: #{tpu_custom_call.1} parent=63 // loop_pre_header
                _
              $region66: #{tpu_custom_call.1} parent=63 // loop_header
                %s1489 = sphi 0, %s1491
                %p1490 = scmp.ge.s32.totalorder %s1489, %s1487
                %s1494 = sphi 0, %s1563
                %s1495 = sphi %s1467, %s1566
                %s1496 = sphi %s1478, %s1567
              $region67: #{tpu_custom_call.1} parent=63 // loop_header_branch
                %1493 = sbr.rel (%p1490) target = $region71
              $region68: #{tpu_custom_call.1} parent=63 // loop_body
                %v1497 = vld [vmem:[%s1495] sm:$0xff]
                %1498 = vst [vmem:[%s1496] sm:$0xff] %v1497
                %v1499 = vld [vmem:[%s1495 + $0x8] sm:$0xff]
                %1500 = vst [vmem:[%s1496 + $0x8] sm:$0xff] %v1499
                %v1501 = vld [vmem:[%s1495 + $0x10] sm:$0xff]
                %1502 = vst [vmem:[%s1496 + $0x10] sm:$0xff] %v1501
                %v1503 = vld [vmem:[%s1495 + $0x18] sm:$0xff]
                %1504 = vst [vmem:[%s1496 + $0x18] sm:$0xff] %v1503
                %v1505 = vld [vmem:[%s1495 + $0x20] sm:$0xff]
                %1506 = vst [vmem:[%s1496 + $0x20] sm:$0xff] %v1505
                %v1507 = vld [vmem:[%s1495 + $0x28] sm:$0xff]
                %1508 = vst [vmem:[%s1496 + $0x28] sm:$0xff] %v1507
                %v1509 = vld [vmem:[%s1495 + $0x30] sm:$0xff]
                %1510 = vst [vmem:[%s1496 + $0x30] sm:$0xff] %v1509
                %v1511 = vld [vmem:[%s1495 + $0x38] sm:$0xff]
                %1512 = vst [vmem:[%s1496 + $0x38] sm:$0xff] %v1511
                %v1513 = vld [vmem:[%s1495 + $0x40] sm:$0xff]
                %1514 = vst [vmem:[%s1496 + $0x40] sm:$0xff] %v1513
                %v1515 = vld [vmem:[%s1495 + $0x48] sm:$0xff]
                %1516 = vst [vmem:[%s1496 + $0x48] sm:$0xff] %v1515
                %v1517 = vld [vmem:[%s1495 + $0x50] sm:$0xff]
                %1518 = vst [vmem:[%s1496 + $0x50] sm:$0xff] %v1517
                %v1519 = vld [vmem:[%s1495 + $0x58] sm:$0xff]
                %1520 = vst [vmem:[%s1496 + $0x58] sm:$0xff] %v1519
                %v1521 = vld [vmem:[%s1495 + $0x60] sm:$0xff]
                %1522 = vst [vmem:[%s1496 + $0x60] sm:$0xff] %v1521
                %v1523 = vld [vmem:[%s1495 + $0x68] sm:$0xff]
                %1524 = vst [vmem:[%s1496 + $0x68] sm:$0xff] %v1523
                %v1525 = vld [vmem:[%s1495 + $0x70] sm:$0xff]
                %1526 = vst [vmem:[%s1496 + $0x70] sm:$0xff] %v1525
                %v1527 = vld [vmem:[%s1495 + $0x78] sm:$0xff]
                %1528 = vst [vmem:[%s1496 + $0x78] sm:$0xff] %v1527
                %v1529 = vld [vmem:[%s1495 + $0x80] sm:$0xff]
                %1530 = vst [vmem:[%s1496 + $0x80] sm:$0xff] %v1529
                %v1531 = vld [vmem:[%s1495 + $0x88] sm:$0xff]
                %1532 = vst [vmem:[%s1496 + $0x88] sm:$0xff] %v1531
                %v1533 = vld [vmem:[%s1495 + $0x90] sm:$0xff]
                %1534 = vst [vmem:[%s1496 + $0x90] sm:$0xff] %v1533
                %v1535 = vld [vmem:[%s1495 + $0x98] sm:$0xff]
                %1536 = vst [vmem:[%s1496 + $0x98] sm:$0xff] %v1535
                %v1537 = vld [vmem:[%s1495 + $0xa0] sm:$0xff]
                %1538 = vst [vmem:[%s1496 + $0xa0] sm:$0xff] %v1537
                %v1539 = vld [vmem:[%s1495 + $0xa8] sm:$0xff]
                %1540 = vst [vmem:[%s1496 + $0xa8] sm:$0xff] %v1539
                %v1541 = vld [vmem:[%s1495 + $0xb0] sm:$0xff]
                %1542 = vst [vmem:[%s1496 + $0xb0] sm:$0xff] %v1541
                %v1543 = vld [vmem:[%s1495 + $0xb8] sm:$0xff]
                %1544 = vst [vmem:[%s1496 + $0xb8] sm:$0xff] %v1543
                %v1545 = vld [vmem:[%s1495 + $0xc0] sm:$0xff]
                %1546 = vst [vmem:[%s1496 + $0xc0] sm:$0xff] %v1545
                %v1547 = vld [vmem:[%s1495 + $0xc8] sm:$0xff]
                %1548 = vst [vmem:[%s1496 + $0xc8] sm:$0xff] %v1547
                %v1549 = vld [vmem:[%s1495 + $0xd0] sm:$0xff]
                %1550 = vst [vmem:[%s1496 + $0xd0] sm:$0xff] %v1549
                %v1551 = vld [vmem:[%s1495 + $0xd8] sm:$0xff]
                %1552 = vst [vmem:[%s1496 + $0xd8] sm:$0xff] %v1551
                %v1553 = vld [vmem:[%s1495 + $0xe0] sm:$0xff]
                %1554 = vst [vmem:[%s1496 + $0xe0] sm:$0xff] %v1553
                %v1555 = vld [vmem:[%s1495 + $0xe8] sm:$0xff]
                %1556 = vst [vmem:[%s1496 + $0xe8] sm:$0xff] %v1555
                %v1557 = vld [vmem:[%s1495 + $0xf0] sm:$0xff]
                %1558 = vst [vmem:[%s1496 + $0xf0] sm:$0xff] %v1557
                %v1559 = vld [vmem:[%s1495 + $0xf8] sm:$0xff]
                %1560 = vst [vmem:[%s1496 + $0xf8] sm:$0xff] %v1559
                %s1561 = sadd.s32 1, %s1494
                %p1562 = scmp.ge.s32.totalorder %s1561, %s1487
                %s1563 = scalar_select %p1562, 0, %s1561
                %s1564 = smul.u32 %s1563, 256
                %s1565 = smul.u32 %s1563, 256
                %s1566 = scalar_lea.vmem %s1467, %s1564 [#allocation3]
                %s1567 = scalar_lea.vmem %s1478, %s1565
              $region69: #{tpu_custom_call.1} parent=63 // loop_footer
                %s1491 = sadd.s32 %s1489, 1
              $region70: #{tpu_custom_call.1} parent=63 // loop_footer_branch
                %1488 = sbr.rel target = $region66
              $region71: #{tpu_custom_call.1} parent=63 // loop_exit
                _
              %s1568 = sshrl.u32 %s1474, 5
              %s1569 = sand.u32 %s1474, 31
              %s1570 = smul.u32 %s1568, 32
              %s1571 = smul.u32 8, %s1570
              %s1572 = scalar_lea.vmem %s1467, %s1571 [#allocation3]
              %s1573 = smul.u32 8, %s1570
              %s1574 = scalar_lea.vmem %s1478, %s1573
              // While loop
              $region72: #{tpu_custom_call.1} parent=63 // loop_pre_header
                _
              $region73: #{tpu_custom_call.1} parent=63 // loop_header
                %s1576 = sphi 0, %s1578
                %p1577 = scmp.ge.s32.totalorder %s1576, %s1569
                %s1581 = sphi 0, %s1588
                %s1582 = sphi %s1572, %s1591
                %s1583 = sphi %s1574, %s1592
              $region74: #{tpu_custom_call.1} parent=63 // loop_header_branch
                %1580 = sbr.rel (%p1577) target = $region78
              $region75: #{tpu_custom_call.1} parent=63 // loop_body
                %v1584 = vld [vmem:[%s1582] sm:$0xff]
                %1585 = vst [vmem:[%s1583] sm:$0xff] %v1584
                %s1586 = sadd.s32 1, %s1581
                %p1587 = scmp.ge.s32.totalorder %s1586, %s1569
                %s1588 = scalar_select %p1587, 0, %s1586
                %s1589 = smul.u32 %s1588, 8
                %s1590 = smul.u32 %s1588, 8
                %s1591 = scalar_lea.vmem %s1572, %s1589 [#allocation3]
                %s1592 = scalar_lea.vmem %s1574, %s1590
              $region76: #{tpu_custom_call.1} parent=63 // loop_footer
                %s1578 = sadd.s32 %s1576, 1
              $region77: #{tpu_custom_call.1} parent=63 // loop_footer_branch
                %1575 = sbr.rel target = $region73
              $region78: #{tpu_custom_call.1} parent=63 // loop_exit
                _
            $region64: #{tpu_custom_call.1} parent=55 // pred_fallthru
              _
          $region56: #{tpu_custom_call.1} parent=51 // pred_fallthru
            _
          %1703 = vnop
        $region52: #{tpu_custom_call.1} parent=47 // pred_fallthru
          _
      $region48: #{tpu_custom_call.1} parent=5 // pred_fallthru
        _
      %p1704 = scmp.le.s32.totalorder 2, %s14
      // Predicated region
      $region101: #{tpu_custom_call.1} parent=5 // pred_check
        %p1705 = pneg %p1704
      $region102: #{tpu_custom_call.1} parent=5 // pred_check_branch
        %1707 = sbr.rel (%p1705) target = $region104
      $region103: #{tpu_custom_call.1} parent=5 // pred_region
        %s1708 = ssub.s32 %s14, 2
        // Predicated region
        $region105: #{tpu_custom_call.1} parent=103 // pred_check
          %p1709 = pneg %p195
        $region106: #{tpu_custom_call.1} parent=103 // pred_check_branch
          %1711 = sbr.rel (%p1709) target = $region108
        $region107: #{tpu_custom_call.1} parent=103 // pred_region
          %s1712 = sand.u32 %s180, 1
          %s1713 = sand.u32 %s180, 1
          %s1714 = smul.addr %s1713, 256
          %s1715 = scalar_lea.vmem [#allocation3], %s1714
        $region108: #{tpu_custom_call.1} parent=103 // pred_fallthru
          _
      $region104: #{tpu_custom_call.1} parent=5 // pred_fallthru
        _
    $region6: #{tpu_custom_call.1} parent=1 // loop_footer
      %s18 = sadd.s32 1, %s14
    $region7: #{tpu_custom_call.1} parent=1 // loop_footer_branch
      %13 = sbr.rel target = $region3
    $region8: #{tpu_custom_call.1} parent=1 // loop_exit
      _

</llo_original>
